<compile_context>
chip_gen: v6e
topology: v6e:2x2x1
jax: 0.10.0
libtpu: 0.0.40
codegen_flags: <defaults>
</compile_context>

<pallas_src>
import functools

import jax
import jax.numpy as jnp
from jax.experimental import pallas as pl
from jax.experimental.pallas import tpu as pltpu


def _round_up(a, b):
    return pl.cdiv(a, b) * b


# ---------------------------------------------------------------------------
# Fused kernel: n_cells x (depthwise conv -> 1x1 conv -> BN -> ReLU) + skip
# ---------------------------------------------------------------------------
def _bblock_kernel(xw_ref, dw0_ref, pw0_ref, b0_ref,
                   dwr_ref, pwr_ref, br_ref,
                   pws_ref, bs_ref, out_ref, *,
                   K, P, H, T, T_tile, n_cells):
    """One (batch, time-tile) block of the whole BBlock.

    xw_ref  : (1, 1, C_in, T_tile + 2H)  zero-padded input window, halo H = n_cells*P
    dw0_ref : (C_in, K)                  cell-0 depthwise weight (f32)
    pw0_ref : (C_out, C_in)              cell-0 pointwise weight * BN scale (bf16)
    b0_ref  : (C_out, 1)                 cell-0 folded bias (dw bias + pw bias + BN)
    dwr_ref : (n_cells-1, C_out, K)      cells 1.. depthwise weights
    pwr_ref : (n_cells-1, C_out, C_out)  cells 1.. folded pointwise weights (bf16)
    br_ref  : (n_cells-1, C_out, 1)      cells 1.. folded biases
    pws_ref : (C_out, C_in)              skip pointwise weight * BN scale (bf16)
    bs_ref  : (C_out, 1)                 skip folded bias
    out_ref : (1, C_out, T_tile)
    """
    tile_start = pl.program_id(1) * T_tile
    x_win = xw_ref[0, 0].astype(jnp.float32)            # (C_in, T_tile + 2H)

    # --- stacked Cells; intermediate activation never leaves VMEM ------------
    # Each cell is a 'valid' depthwise conv on a window that shrinks by 2P,
    # so after n_cells cells exactly T_tile columns remain.
    cur = x_win
    for i in range(n_cells):
        if i == 0:
            dw, pw, b = dw0_ref[...], pw0_ref[...], b0_ref[...]
        else:
            dw, pw, b = dwr_ref[i - 1], pwr_ref[i - 1], br_ref[i - 1]

        w_out = cur.shape[-1] - 2 * P
        # depthwise conv taps (VPU, f32)
        z = dw[:, 0:1] * cur[:, 0:w_out]
        for k in range(1, K):
            z = z + dw[:, k:k + 1] * cur[:, k:k + w_out]
        # pointwise 1x1 conv (+ folded depthwise bias & BatchNorm):
        # bf16 MXU operands, f32 accumulate.
        u = jnp.dot(pw, z.astype(pw.dtype),
                    preferred_element_type=jnp.float32) + b

        if i < n_cells - 1:
            u = jnp.maximum(u, 0.0)                      # Cell ReLU
            # Re-create the reference's per-Cell zero padding: any column whose
            # global time index lies outside [0, T) must be exactly zero before
            # the next Cell's depthwise conv consumes it (only affects boundary
            # tiles; a no-op select for interior tiles).
            g = (tile_start - (H - (i + 1) * P)
                 + jax.lax.broadcasted_iota(jnp.int32, (1, w_out), 1))
            u = jnp.where((g >= 0) & (g < T), u, 0.0)
        cur = u                                          # (C_out, w_out)

    y = cur                                              # (C_out, T_tile)

    # --- skip connection: 1x1 conv + BN on the raw input tile, add, ReLU -----
    xs = x_win[:, H:H + T_tile]
    s = jnp.dot(pws_ref[...], xs.astype(pws_ref.dtype),
                preferred_element_type=jnp.float32) + bs_ref[...]
    out_ref[0] = jnp.maximum(y + s, 0.0).astype(out_ref.dtype)


# ---------------------------------------------------------------------------
# Wrapper
# ---------------------------------------------------------------------------
def bblock_forward(x, params, *, K, t_tile=512, mxu_dtype=jnp.bfloat16):
    """x: (N, C_in, T) -> (N, C_out, T). Fused QuartzNet BBlock forward."""
    assert K % 2 == 1, "only odd kernel_size matches PyTorch padding=K//2 'same' length"
    cells = params["cells"]
    skip = params["skip"]
    n_cells = len(cells)
    assert n_cells >= 2, "fused kernel expects block_size >= 2"

    N, Cin, T = x.shape
    Cout = cells[0]["pw"].shape[0]
    P = K // 2
    H = n_cells * P                      # total halo needed by the fused block

    # Time tiling: multiple of 128 (lane-dense stores), clamped to the problem.
    assert t_tile % 128 == 0
    t_tile = max(128, min(t_tile, _round_up(T, 128)))
    Tp = _round_up(T, t_tile)
    nT = Tp // t_tile
    Wd = t_tile + 2 * H                  # per-tile input window width

    # --- fold depthwise bias + eval-mode BatchNorm into the 1x1 conv ---------
    def fold_cell(c):
        scale = c["gamma"] / jnp.sqrt(c["var"] + 1e-5)                  # (Cout,)
        pw_eff = (c["pw"] * scale[:, None]).astype(mxu_dtype)           # (Cout, Cin)
        bias_eff = scale * (c["pwb"] + c["pw"] @ c["dwb"] - c["mean"]) + c["beta"]
        return pw_eff, bias_eff[:, None].astype(jnp.float32), c["dw"].astype(jnp.float32)

    folded = [fold_cell(c) for c in cells]
    pw0, b0, dw0 = folded[0]
    dwr = jnp.stack([f[2] for f in folded[1:]])          # (n_cells-1, Cout, K)
    pwr = jnp.stack([f[0] for f in folded[1:]])          # (n_cells-1, Cout, Cout)
    br = jnp.stack([f[1] for f in folded[1:]])           # (n_cells-1, Cout, 1)

    s_scale = skip["gamma"] / jnp.sqrt(skip["var"] + 1e-5)
    pws = (skip["pw"] * s_scale[:, None]).astype(mxu_dtype)
    bs = (s_scale * (skip["pwb"] - skip["mean"]) + skip["beta"])[:, None].astype(jnp.float32)

    # --- one-time pad + unfold into overlapping per-tile windows -------------
    xpad = jnp.pad(x, ((0, 0), (0, 0), (H, H + Tp - T)))                # (N, Cin, Tp+2H)
    offs = (jnp.arange(nT) * t_tile)[:, None] + jnp.arange(Wd)[None, :]  # (nT, Wd)
    xw = jnp.transpose(xpad[:, :, offs], (0, 2, 1, 3))                  # (N, nT, Cin, Wd)

    kernel = functools.partial(_bblock_kernel, K=K, P=P, H=H, T=T,
                               T_tile=t_tile, n_cells=n_cells)

    out = pl.pallas_call(
        kernel,
        out_shape=jax.ShapeDtypeStruct((N, Cout, Tp), x.dtype),
        grid=(N, nT),
        in_specs=[
            pl.BlockSpec((1, 1, Cin, Wd), lambda n, t: (n, t, 0, 0)),
            # weights: constant index maps -> resident in VMEM across the grid
            pl.BlockSpec((Cin, K), lambda n, t: (0, 0)),
            pl.BlockSpec((Cout, Cin), lambda n, t: (0, 0)),
            pl.BlockSpec((Cout, 1), lambda n, t: (0, 0)),
            pl.BlockSpec((n_cells - 1, Cout, K), lambda n, t: (0, 0, 0)),
            pl.BlockSpec((n_cells - 1, Cout, Cout), lambda n, t: (0, 0, 0)),
            pl.BlockSpec((n_cells - 1, Cout, 1), lambda n, t: (0, 0, 0)),
            pl.BlockSpec((Cout, Cin), lambda n, t: (0, 0)),
            pl.BlockSpec((Cout, 1), lambda n, t: (0, 0)),
        ],
        out_specs=pl.BlockSpec((1, Cout, t_tile), lambda n, t: (n, 0, t)),
        compiler_params=pltpu.CompilerParams(
            dimension_semantics=("parallel", "parallel"),
            vmem_limit_bytes=64 * 1024 * 1024,   # re-derive t_tile for v7x (64 MiB VMEM)
        ),
    )(xw, dw0, pw0, b0, dwr, pwr, br, pws, bs)

    return out[:, :, :T]


# ---------------------------------------------------------------------------
# Pure-JAX reference (f32) for correctness checking
# ---------------------------------------------------------------------------
def _bblock_reference(x, params, *, K):
    P = K // 2

    def bn(u, c):
        scale = c["gamma"] / jnp.sqrt(c["var"] + 1e-5)
        return scale[None, :, None] * (u - c["mean"][None, :, None]) + c["beta"][None, :, None]

    def cell(h, c, relu):
        T = h.shape[-1]
        hp = jnp.pad(h, ((0, 0), (0, 0), (P, P)))
        z = sum(c["dw"][None, :, k, None] * hp[:, :, k:k + T] for k in range(K))
        z = z + c["dwb"][None, :, None]
        u = jnp.einsum("oc,nct->not", c["pw"], z) + c["pwb"][None, :, None]
        u = bn(u, c)
        return jnp.maximum(u, 0.0) if relu else u

    y = x
    cells = params["cells"]
    for i, c in enumerate(cells):
        y = cell(y, c, relu=(i < len(cells) - 1))
    s = params["skip"]
    u = jnp.einsum("oc,nct->not", s["pw"], x) + s["pwb"][None, :, None]
    u = bn(u, s)
    return jnp.maximum(y + u, 0.0)


# ---------------------------------------------------------------------------
# Deterministic parameter initialization (shapes follow the PyTorch module)
# ---------------------------------------------------------------------------
def init_params(key, c_in, c_out, K, block_size=5):
    def bn_params(k, ch):
        k1, k2, k3, k4 = jax.random.split(k, 4)
        return dict(
            gamma=1.0 + 0.1 * jax.random.normal(k1, (ch,), jnp.float32),
            beta=0.1 * jax.random.normal(k2, (ch,), jnp.float32),
            mean=0.1 * jax.random.normal(k3, (ch,), jnp.float32),
            var=jax.random.uniform(k4, (ch,), jnp.float32, 0.5, 1.5),
        )

    keys = jax.random.split(key, block_size + 1)
    cells = []
    for i in range(block_size):
        ch_in = c_in if i == 0 else c_out
        k1, k2, k3, k4, k5 = jax.random.split(keys[i], 5)
        cells.append(dict(
            dw=0.2 * jax.random.normal(k1, (ch_in, K), jnp.float32),       # Conv1d (ch_in,1,K)
            dwb=0.1 * jax.random.normal(k2, (ch_in,), jnp.float32),
            pw=0.2 * jax.random.normal(k3, (c_out, ch_in), jnp.float32),   # Conv1d (c_out,ch_in,1)
            pwb=0.1 * jax.random.normal(k4, (c_out,), jnp.float32),
            **bn_params(k5, c_out),
        ))
    k1, k2, k3 = jax.random.split(keys[-1], 3)
    skip = dict(
        pw=0.2 * jax.random.normal(k1, (c_out, c_in), jnp.float32),
        pwb=0.1 * jax.random.normal(k2, (c_out,), jnp.float32),
        **bn_params(k3, c_out),
    )
    return dict(cells=cells, skip=skip)


# ---------------------------------------------------------------------------
if __name__ == "__main__":
    N, C_IN, C_OUT, T, K, BLOCK = 2, 4, 8, 16, 5, 5

    key = jax.random.PRNGKey(0)
    k_params, k_x = jax.random.split(key)
    params = init_params(k_params, C_IN, C_OUT, K, BLOCK)
    x = jax.random.normal(k_x, (N, C_IN, T), jnp.float32)

    out = bblock_forward(x, params, K=K)
    jax.block_until_ready(out)
    assert out.shape == (N, C_OUT, T)

    # correctness check vs pure-JAX f32 reference (loose tol for bf16 MXU path)
    ref = _bblock_reference(x, params, K=K)
    err = float(jnp.max(jnp.abs(out - ref)))
    tol = 5e-2 * (float(jnp.max(jnp.abs(ref))) + 1.0)
    assert err <= tol, f"mismatch vs reference: max|diff|={err} (tol={tol})"

    print("KERNEL_OK")
</pallas_src>

<mosaic_0001>
module attributes {stable_mosaic.version = 11 : i64} {
  func.func @_bblock_kernel(%arg0: i32, %arg1: i32, %arg2: memref<1x1x4x148xf32, #tpu.memory_space<vmem>>, %arg3: memref<4x5xf32, #tpu.memory_space<vmem>>, %arg4: memref<8x4xbf16, #tpu.memory_space<vmem>>, %arg5: memref<8x1xf32, #tpu.memory_space<vmem>>, %arg6: memref<4x8x5xf32, #tpu.memory_space<vmem>>, %arg7: memref<4x8x8xbf16, #tpu.memory_space<vmem>>, %arg8: memref<4x8x1xf32, #tpu.memory_space<vmem>>, %arg9: memref<8x4xbf16, #tpu.memory_space<vmem>>, %arg10: memref<8x1xf32, #tpu.memory_space<vmem>>, %arg11: memref<1x8x128xf32, #tpu.memory_space<vmem>>) attributes {dimension_semantics = [#tpu.dimension_semantics<parallel>, #tpu.dimension_semantics<parallel>], iteration_bounds = array<i64: 2, 1>, scalar_prefetch = 0 : i64, scratch_operands = 0 : i64, tpu.core_type = #tpu.core_type<tc>, window_params = [{transform_indices = @transform_0, window_bounds = array<i64: 1, 1, 4, 148>}, {pipeline_mode = #tpu.pipeline_mode<synchronous>, transform_indices = @transform_1, window_bounds = array<i64: 4, 5>}, {pipeline_mode = #tpu.pipeline_mode<synchronous>, transform_indices = @transform_2, window_bounds = array<i64: 8, 4>}, {pipeline_mode = #tpu.pipeline_mode<synchronous>, transform_indices = @transform_3, window_bounds = array<i64: 8, 1>}, {pipeline_mode = #tpu.pipeline_mode<synchronous>, transform_indices = @transform_4, window_bounds = array<i64: 4, 8, 5>}, {pipeline_mode = #tpu.pipeline_mode<synchronous>, transform_indices = @transform_5, window_bounds = array<i64: 4, 8, 8>}, {pipeline_mode = #tpu.pipeline_mode<synchronous>, transform_indices = @transform_6, window_bounds = array<i64: 4, 8, 1>}, {pipeline_mode = #tpu.pipeline_mode<synchronous>, transform_indices = @transform_7, window_bounds = array<i64: 8, 4>}, {pipeline_mode = #tpu.pipeline_mode<synchronous>, transform_indices = @transform_8, window_bounds = array<i64: 8, 1>}, {transform_indices = @transform_9, window_bounds = array<i64: 1, 8, 128>}]} {
    %c128_i32 = arith.constant 128 : i32
    %0 = arith.muli %arg1, %c128_i32 : i32
    %c0 = arith.constant 0 : index
    %c0_0 = arith.constant 0 : index
    %c0_1 = arith.constant 0 : index
    %c0_2 = arith.constant 0 : index
    %1 = vector.load %arg2[%c0, %c0_0, %c0_1, %c0_2] : memref<1x1x4x148xf32, #tpu.memory_space<vmem>>, vector<1x1x4x148xf32>
    %2 = vector.shape_cast %1 : vector<1x1x4x148xf32> to vector<4x148xf32>
    %c0_3 = arith.constant 0 : index
    %c0_4 = arith.constant 0 : index
    %3 = vector.load %arg3[%c0_3, %c0_4] : memref<4x5xf32, #tpu.memory_space<vmem>>, vector<4x5xf32>
    %c0_5 = arith.constant 0 : index
    %c0_6 = arith.constant 0 : index
    %4 = vector.load %arg4[%c0_5, %c0_6] : memref<8x4xbf16, #tpu.memory_space<vmem>>, vector<8x4xbf16>
    %c0_7 = arith.constant 0 : index
    %c0_8 = arith.constant 0 : index
    %5 = vector.load %arg5[%c0_7, %c0_8] : memref<8x1xf32, #tpu.memory_space<vmem>>, vector<8x1xf32>
    %6 = vector.extract_strided_slice %3 {offsets = [0, 0], sizes = [4, 1], strides = [1, 1]} : vector<4x5xf32> to vector<4x1xf32>
    %7 = vector.extract_strided_slice %2 {offsets = [0, 0], sizes = [4, 144], strides = [1, 1]} : vector<4x148xf32> to vector<4x144xf32>
    %8 = vector.broadcast %6 : vector<4x1xf32> to vector<4x144xf32>
    %9 = arith.mulf %8, %7 : vector<4x144xf32>
    %10 = vector.extract_strided_slice %3 {offsets = [0, 1], sizes = [4, 1], strides = [1, 1]} : vector<4x5xf32> to vector<4x1xf32>
    %11 = vector.extract_strided_slice %2 {offsets = [0, 1], sizes = [4, 144], strides = [1, 1]} : vector<4x148xf32> to vector<4x144xf32>
    %12 = vector.broadcast %10 : vector<4x1xf32> to vector<4x144xf32>
    %13 = arith.mulf %12, %11 : vector<4x144xf32>
    %14 = arith.addf %9, %13 : vector<4x144xf32>
    %15 = vector.extract_strided_slice %3 {offsets = [0, 2], sizes = [4, 1], strides = [1, 1]} : vector<4x5xf32> to vector<4x1xf32>
    %16 = vector.extract_strided_slice %2 {offsets = [0, 2], sizes = [4, 144], strides = [1, 1]} : vector<4x148xf32> to vector<4x144xf32>
    %17 = vector.broadcast %15 : vector<4x1xf32> to vector<4x144xf32>
    %18 = arith.mulf %17, %16 : vector<4x144xf32>
    %19 = arith.addf %14, %18 : vector<4x144xf32>
    %20 = vector.extract_strided_slice %3 {offsets = [0, 3], sizes = [4, 1], strides = [1, 1]} : vector<4x5xf32> to vector<4x1xf32>
    %21 = vector.extract_strided_slice %2 {offsets = [0, 3], sizes = [4, 144], strides = [1, 1]} : vector<4x148xf32> to vector<4x144xf32>
    %22 = vector.broadcast %20 : vector<4x1xf32> to vector<4x144xf32>
    %23 = arith.mulf %22, %21 : vector<4x144xf32>
    %24 = arith.addf %19, %23 : vector<4x144xf32>
    %25 = vector.extract_strided_slice %3 {offsets = [0, 4], sizes = [4, 1], strides = [1, 1]} : vector<4x5xf32> to vector<4x1xf32>
    %26 = vector.extract_strided_slice %2 {offsets = [0, 4], sizes = [4, 144], strides = [1, 1]} : vector<4x148xf32> to vector<4x144xf32>
    %27 = vector.broadcast %25 : vector<4x1xf32> to vector<4x144xf32>
    %28 = arith.mulf %27, %26 : vector<4x144xf32>
    %29 = arith.addf %24, %28 : vector<4x144xf32>
    %30 = arith.truncf %29 : vector<4x144xf32> to vector<4x144xbf16>
    %cst = arith.constant dense<0.000000e+00> : vector<8x144xf32>
    %31 = tpu.matmul %4, %30, %cst {dimension_numbers = #tpu.dot_dimension_numbers<[1], [0], [0], [1], [0, 0, 1, 1], [], []>} : vector<8x4xbf16>, vector<4x144xbf16>, vector<8x144xf32> -> vector<8x144xf32>
    %32 = vector.broadcast %5 : vector<8x1xf32> to vector<8x144xf32>
    %33 = arith.addf %31, %32 : vector<8x144xf32>
    %cst_9 = arith.constant 0.000000e+00 : f32
    %34 = vector.broadcast %cst_9 : f32 to vector<8x144xf32>
    %35 = arith.maximumf %33, %34 : vector<8x144xf32>
    %c8_i32 = arith.constant 8 : i32
    %36 = arith.subi %0, %c8_i32 : i32
    %37 = tpu.iota {dimensions = array<i32: 1>} : vector<1x144xi32>
    %38 = vector.broadcast %36 : i32 to vector<1x144xi32>
    %39 = arith.addi %38, %37 : vector<1x144xi32>
    %c0_i32 = arith.constant 0 : i32
    %40 = vector.broadcast %c0_i32 : i32 to vector<1x144xi32>
    %41 = arith.cmpi sge, %39, %40 : vector<1x144xi32>
    %c16_i32 = arith.constant 16 : i32
    %42 = vector.broadcast %c16_i32 : i32 to vector<1x144xi32>
    %43 = arith.cmpi slt, %39, %42 : vector<1x144xi32>
    %44 = arith.andi %41, %43 : vector<1x144xi1>
    %cst_10 = arith.constant 0.000000e+00 : f32
    %45 = vector.shape_cast %44 : vector<1x144xi1> to vector<1x144xi1>
    %46 = vector.broadcast %45 : vector<1x144xi1> to vector<8x144xi1>
    %47 = vector.broadcast %cst_10 : f32 to vector<8x144xf32>
    %48 = arith.select %46, %35, %47 : vector<8x144xi1>, vector<8x144xf32>
    %c0_11 = arith.constant 0 : index
    %c0_12 = arith.constant 0 : index
    %c0_13 = arith.constant 0 : index
    %49 = vector.load %arg6[%c0_11, %c0_12, %c0_13] : memref<4x8x5xf32, #tpu.memory_space<vmem>>, vector<1x8x5xf32>
    %50 = vector.shape_cast %49 : vector<1x8x5xf32> to vector<8x5xf32>
    %c0_14 = arith.constant 0 : index
    %c0_15 = arith.constant 0 : index
    %c0_16 = arith.constant 0 : index
    %51 = vector.load %arg7[%c0_14, %c0_15, %c0_16] : memref<4x8x8xbf16, #tpu.memory_space<vmem>>, vector<1x8x8xbf16>
    %52 = vector.shape_cast %51 : vector<1x8x8xbf16> to vector<8x8xbf16>
    %c0_17 = arith.constant 0 : index
    %c0_18 = arith.constant 0 : index
    %c0_19 = arith.constant 0 : index
    %53 = vector.load %arg8[%c0_17, %c0_18, %c0_19] : memref<4x8x1xf32, #tpu.memory_space<vmem>>, vector<1x8x1xf32>
    %54 = vector.shape_cast %53 : vector<1x8x1xf32> to vector<8x1xf32>
    %55 = vector.extract_strided_slice %50 {offsets = [0, 0], sizes = [8, 1], strides = [1, 1]} : vector<8x5xf32> to vector<8x1xf32>
    %56 = vector.extract_strided_slice %48 {offsets = [0, 0], sizes = [8, 140], strides = [1, 1]} : vector<8x144xf32> to vector<8x140xf32>
    %57 = vector.broadcast %55 : vector<8x1xf32> to vector<8x140xf32>
    %58 = arith.mulf %57, %56 : vector<8x140xf32>
    %59 = vector.extract_strided_slice %50 {offsets = [0, 1], sizes = [8, 1], strides = [1, 1]} : vector<8x5xf32> to vector<8x1xf32>
    %60 = vector.extract_strided_slice %48 {offsets = [0, 1], sizes = [8, 140], strides = [1, 1]} : vector<8x144xf32> to vector<8x140xf32>
    %61 = vector.broadcast %59 : vector<8x1xf32> to vector<8x140xf32>
    %62 = arith.mulf %61, %60 : vector<8x140xf32>
    %63 = arith.addf %58, %62 : vector<8x140xf32>
    %64 = vector.extract_strided_slice %50 {offsets = [0, 2], sizes = [8, 1], strides = [1, 1]} : vector<8x5xf32> to vector<8x1xf32>
    %65 = vector.extract_strided_slice %48 {offsets = [0, 2], sizes = [8, 140], strides = [1, 1]} : vector<8x144xf32> to vector<8x140xf32>
    %66 = vector.broadcast %64 : vector<8x1xf32> to vector<8x140xf32>
    %67 = arith.mulf %66, %65 : vector<8x140xf32>
    %68 = arith.addf %63, %67 : vector<8x140xf32>
    %69 = vector.extract_strided_slice %50 {offsets = [0, 3], sizes = [8, 1], strides = [1, 1]} : vector<8x5xf32> to vector<8x1xf32>
    %70 = vector.extract_strided_slice %48 {offsets = [0, 3], sizes = [8, 140], strides = [1, 1]} : vector<8x144xf32> to vector<8x140xf32>
    %71 = vector.broadcast %69 : vector<8x1xf32> to vector<8x140xf32>
    %72 = arith.mulf %71, %70 : vector<8x140xf32>
    %73 = arith.addf %68, %72 : vector<8x140xf32>
    %74 = vector.extract_strided_slice %50 {offsets = [0, 4], sizes = [8, 1], strides = [1, 1]} : vector<8x5xf32> to vector<8x1xf32>
    %75 = vector.extract_strided_slice %48 {offsets = [0, 4], sizes = [8, 140], strides = [1, 1]} : vector<8x144xf32> to vector<8x140xf32>
    %76 = vector.broadcast %74 : vector<8x1xf32> to vector<8x140xf32>
    %77 = arith.mulf %76, %75 : vector<8x140xf32>
    %78 = arith.addf %73, %77 : vector<8x140xf32>
    %79 = arith.truncf %78 : vector<8x140xf32> to vector<8x140xbf16>
    %cst_20 = arith.constant dense<0.000000e+00> : vector<8x140xf32>
    %80 = tpu.matmul %52, %79, %cst_20 {dimension_numbers = #tpu.dot_dimension_numbers<[1], [0], [0], [1], [0, 0, 1, 1], [], []>} : vector<8x8xbf16>, vector<8x140xbf16>, vector<8x140xf32> -> vector<8x140xf32>
    %81 = vector.broadcast %54 : vector<8x1xf32> to vector<8x140xf32>
    %82 = arith.addf %80, %81 : vector<8x140xf32>
    %cst_21 = arith.constant 0.000000e+00 : f32
    %83 = vector.broadcast %cst_21 : f32 to vector<8x140xf32>
    %84 = arith.maximumf %82, %83 : vector<8x140xf32>
    %c6_i32 = arith.constant 6 : i32
    %85 = arith.subi %0, %c6_i32 : i32
    %86 = tpu.iota {dimensions = array<i32: 1>} : vector<1x140xi32>
    %87 = vector.broadcast %85 : i32 to vector<1x140xi32>
    %88 = arith.addi %87, %86 : vector<1x140xi32>
    %c0_i32_22 = arith.constant 0 : i32
    %89 = vector.broadcast %c0_i32_22 : i32 to vector<1x140xi32>
    %90 = arith.cmpi sge, %88, %89 : vector<1x140xi32>
    %c16_i32_23 = arith.constant 16 : i32
    %91 = vector.broadcast %c16_i32_23 : i32 to vector<1x140xi32>
    %92 = arith.cmpi slt, %88, %91 : vector<1x140xi32>
    %93 = arith.andi %90, %92 : vector<1x140xi1>
    %cst_24 = arith.constant 0.000000e+00 : f32
    %94 = vector.shape_cast %93 : vector<1x140xi1> to vector<1x140xi1>
    %95 = vector.broadcast %94 : vector<1x140xi1> to vector<8x140xi1>
    %96 = vector.broadcast %cst_24 : f32 to vector<8x140xf32>
    %97 = arith.select %95, %84, %96 : vector<8x140xi1>, vector<8x140xf32>
    %c1 = arith.constant 1 : index
    %c0_25 = arith.constant 0 : index
    %c0_26 = arith.constant 0 : index
    %98 = vector.load %arg6[%c1, %c0_25, %c0_26] : memref<4x8x5xf32, #tpu.memory_space<vmem>>, vector<1x8x5xf32>
    %99 = vector.shape_cast %98 : vector<1x8x5xf32> to vector<8x5xf32>
    %c1_27 = arith.constant 1 : index
    %c0_28 = arith.constant 0 : index
    %c0_29 = arith.constant 0 : index
    %100 = vector.load %arg7[%c1_27, %c0_28, %c0_29] : memref<4x8x8xbf16, #tpu.memory_space<vmem>>, vector<1x8x8xbf16>
    %101 = vector.shape_cast %100 : vector<1x8x8xbf16> to vector<8x8xbf16>
    %c1_30 = arith.constant 1 : index
    %c0_31 = arith.constant 0 : index
    %c0_32 = arith.constant 0 : index
    %102 = vector.load %arg8[%c1_30, %c0_31, %c0_32] : memref<4x8x1xf32, #tpu.memory_space<vmem>>, vector<1x8x1xf32>
    %103 = vector.shape_cast %102 : vector<1x8x1xf32> to vector<8x1xf32>
    %104 = vector.extract_strided_slice %99 {offsets = [0, 0], sizes = [8, 1], strides = [1, 1]} : vector<8x5xf32> to vector<8x1xf32>
    %105 = vector.extract_strided_slice %97 {offsets = [0, 0], sizes = [8, 136], strides = [1, 1]} : vector<8x140xf32> to vector<8x136xf32>
    %106 = vector.broadcast %104 : vector<8x1xf32> to vector<8x136xf32>
    %107 = arith.mulf %106, %105 : vector<8x136xf32>
    %108 = vector.extract_strided_slice %99 {offsets = [0, 1], sizes = [8, 1], strides = [1, 1]} : vector<8x5xf32> to vector<8x1xf32>
    %109 = vector.extract_strided_slice %97 {offsets = [0, 1], sizes = [8, 136], strides = [1, 1]} : vector<8x140xf32> to vector<8x136xf32>
    %110 = vector.broadcast %108 : vector<8x1xf32> to vector<8x136xf32>
    %111 = arith.mulf %110, %109 : vector<8x136xf32>
    %112 = arith.addf %107, %111 : vector<8x136xf32>
    %113 = vector.extract_strided_slice %99 {offsets = [0, 2], sizes = [8, 1], strides = [1, 1]} : vector<8x5xf32> to vector<8x1xf32>
    %114 = vector.extract_strided_slice %97 {offsets = [0, 2], sizes = [8, 136], strides = [1, 1]} : vector<8x140xf32> to vector<8x136xf32>
    %115 = vector.broadcast %113 : vector<8x1xf32> to vector<8x136xf32>
    %116 = arith.mulf %115, %114 : vector<8x136xf32>
    %117 = arith.addf %112, %116 : vector<8x136xf32>
    %118 = vector.extract_strided_slice %99 {offsets = [0, 3], sizes = [8, 1], strides = [1, 1]} : vector<8x5xf32> to vector<8x1xf32>
    %119 = vector.extract_strided_slice %97 {offsets = [0, 3], sizes = [8, 136], strides = [1, 1]} : vector<8x140xf32> to vector<8x136xf32>
    %120 = vector.broadcast %118 : vector<8x1xf32> to vector<8x136xf32>
    %121 = arith.mulf %120, %119 : vector<8x136xf32>
    %122 = arith.addf %117, %121 : vector<8x136xf32>
    %123 = vector.extract_strided_slice %99 {offsets = [0, 4], sizes = [8, 1], strides = [1, 1]} : vector<8x5xf32> to vector<8x1xf32>
    %124 = vector.extract_strided_slice %97 {offsets = [0, 4], sizes = [8, 136], strides = [1, 1]} : vector<8x140xf32> to vector<8x136xf32>
    %125 = vector.broadcast %123 : vector<8x1xf32> to vector<8x136xf32>
    %126 = arith.mulf %125, %124 : vector<8x136xf32>
    %127 = arith.addf %122, %126 : vector<8x136xf32>
    %128 = arith.truncf %127 : vector<8x136xf32> to vector<8x136xbf16>
    %cst_33 = arith.constant dense<0.000000e+00> : vector<8x136xf32>
    %129 = tpu.matmul %101, %128, %cst_33 {dimension_numbers = #tpu.dot_dimension_numbers<[1], [0], [0], [1], [0, 0, 1, 1], [], []>} : vector<8x8xbf16>, vector<8x136xbf16>, vector<8x136xf32> -> vector<8x136xf32>
    %130 = vector.broadcast %103 : vector<8x1xf32> to vector<8x136xf32>
    %131 = arith.addf %129, %130 : vector<8x136xf32>
    %cst_34 = arith.constant 0.000000e+00 : f32
    %132 = vector.broadcast %cst_34 : f32 to vector<8x136xf32>
    %133 = arith.maximumf %131, %132 : vector<8x136xf32>
    %c4_i32 = arith.constant 4 : i32
    %134 = arith.subi %0, %c4_i32 : i32
    %135 = tpu.iota {dimensions = array<i32: 1>} : vector<1x136xi32>
    %136 = vector.broadcast %134 : i32 to vector<1x136xi32>
    %137 = arith.addi %136, %135 : vector<1x136xi32>
    %c0_i32_35 = arith.constant 0 : i32
    %138 = vector.broadcast %c0_i32_35 : i32 to vector<1x136xi32>
    %139 = arith.cmpi sge, %137, %138 : vector<1x136xi32>
    %c16_i32_36 = arith.constant 16 : i32
    %140 = vector.broadcast %c16_i32_36 : i32 to vector<1x136xi32>
    %141 = arith.cmpi slt, %137, %140 : vector<1x136xi32>
    %142 = arith.andi %139, %141 : vector<1x136xi1>
    %cst_37 = arith.constant 0.000000e+00 : f32
    %143 = vector.shape_cast %142 : vector<1x136xi1> to vector<1x136xi1>
    %144 = vector.broadcast %143 : vector<1x136xi1> to vector<8x136xi1>
    %145 = vector.broadcast %cst_37 : f32 to vector<8x136xf32>
    %146 = arith.select %144, %133, %145 : vector<8x136xi1>, vector<8x136xf32>
    %c2 = arith.constant 2 : index
    %c0_38 = arith.constant 0 : index
    %c0_39 = arith.constant 0 : index
    %147 = vector.load %arg6[%c2, %c0_38, %c0_39] : memref<4x8x5xf32, #tpu.memory_space<vmem>>, vector<1x8x5xf32>
    %148 = vector.shape_cast %147 : vector<1x8x5xf32> to vector<8x5xf32>
    %c2_40 = arith.constant 2 : index
    %c0_41 = arith.constant 0 : index
    %c0_42 = arith.constant 0 : index
    %149 = vector.load %arg7[%c2_40, %c0_41, %c0_42] : memref<4x8x8xbf16, #tpu.memory_space<vmem>>, vector<1x8x8xbf16>
    %150 = vector.shape_cast %149 : vector<1x8x8xbf16> to vector<8x8xbf16>
    %c2_43 = arith.constant 2 : index
    %c0_44 = arith.constant 0 : index
    %c0_45 = arith.constant 0 : index
    %151 = vector.load %arg8[%c2_43, %c0_44, %c0_45] : memref<4x8x1xf32, #tpu.memory_space<vmem>>, vector<1x8x1xf32>
    %152 = vector.shape_cast %151 : vector<1x8x1xf32> to vector<8x1xf32>
    %153 = vector.extract_strided_slice %148 {offsets = [0, 0], sizes = [8, 1], strides = [1, 1]} : vector<8x5xf32> to vector<8x1xf32>
    %154 = vector.extract_strided_slice %146 {offsets = [0, 0], sizes = [8, 132], strides = [1, 1]} : vector<8x136xf32> to vector<8x132xf32>
    %155 = vector.broadcast %153 : vector<8x1xf32> to vector<8x132xf32>
    %156 = arith.mulf %155, %154 : vector<8x132xf32>
    %157 = vector.extract_strided_slice %148 {offsets = [0, 1], sizes = [8, 1], strides = [1, 1]} : vector<8x5xf32> to vector<8x1xf32>
    %158 = vector.extract_strided_slice %146 {offsets = [0, 1], sizes = [8, 132], strides = [1, 1]} : vector<8x136xf32> to vector<8x132xf32>
    %159 = vector.broadcast %157 : vector<8x1xf32> to vector<8x132xf32>
    %160 = arith.mulf %159, %158 : vector<8x132xf32>
    %161 = arith.addf %156, %160 : vector<8x132xf32>
    %162 = vector.extract_strided_slice %148 {offsets = [0, 2], sizes = [8, 1], strides = [1, 1]} : vector<8x5xf32> to vector<8x1xf32>
    %163 = vector.extract_strided_slice %146 {offsets = [0, 2], sizes = [8, 132], strides = [1, 1]} : vector<8x136xf32> to vector<8x132xf32>
    %164 = vector.broadcast %162 : vector<8x1xf32> to vector<8x132xf32>
    %165 = arith.mulf %164, %163 : vector<8x132xf32>
    %166 = arith.addf %161, %165 : vector<8x132xf32>
    %167 = vector.extract_strided_slice %148 {offsets = [0, 3], sizes = [8, 1], strides = [1, 1]} : vector<8x5xf32> to vector<8x1xf32>
    %168 = vector.extract_strided_slice %146 {offsets = [0, 3], sizes = [8, 132], strides = [1, 1]} : vector<8x136xf32> to vector<8x132xf32>
    %169 = vector.broadcast %167 : vector<8x1xf32> to vector<8x132xf32>
    %170 = arith.mulf %169, %168 : vector<8x132xf32>
    %171 = arith.addf %166, %170 : vector<8x132xf32>
    %172 = vector.extract_strided_slice %148 {offsets = [0, 4], sizes = [8, 1], strides = [1, 1]} : vector<8x5xf32> to vector<8x1xf32>
    %173 = vector.extract_strided_slice %146 {offsets = [0, 4], sizes = [8, 132], strides = [1, 1]} : vector<8x136xf32> to vector<8x132xf32>
    %174 = vector.broadcast %172 : vector<8x1xf32> to vector<8x132xf32>
    %175 = arith.mulf %174, %173 : vector<8x132xf32>
    %176 = arith.addf %171, %175 : vector<8x132xf32>
    %177 = arith.truncf %176 : vector<8x132xf32> to vector<8x132xbf16>
    %cst_46 = arith.constant dense<0.000000e+00> : vector<8x132xf32>
    %178 = tpu.matmul %150, %177, %cst_46 {dimension_numbers = #tpu.dot_dimension_numbers<[1], [0], [0], [1], [0, 0, 1, 1], [], []>} : vector<8x8xbf16>, vector<8x132xbf16>, vector<8x132xf32> -> vector<8x132xf32>
    %179 = vector.broadcast %152 : vector<8x1xf32> to vector<8x132xf32>
    %180 = arith.addf %178, %179 : vector<8x132xf32>
    %cst_47 = arith.constant 0.000000e+00 : f32
    %181 = vector.broadcast %cst_47 : f32 to vector<8x132xf32>
    %182 = arith.maximumf %180, %181 : vector<8x132xf32>
    %c2_i32 = arith.constant 2 : i32
    %183 = arith.subi %0, %c2_i32 : i32
    %184 = tpu.iota {dimensions = array<i32: 1>} : vector<1x132xi32>
    %185 = vector.broadcast %183 : i32 to vector<1x132xi32>
    %186 = arith.addi %185, %184 : vector<1x132xi32>
    %c0_i32_48 = arith.constant 0 : i32
    %187 = vector.broadcast %c0_i32_48 : i32 to vector<1x132xi32>
    %188 = arith.cmpi sge, %186, %187 : vector<1x132xi32>
    %c16_i32_49 = arith.constant 16 : i32
    %189 = vector.broadcast %c16_i32_49 : i32 to vector<1x132xi32>
    %190 = arith.cmpi slt, %186, %189 : vector<1x132xi32>
    %191 = arith.andi %188, %190 : vector<1x132xi1>
    %cst_50 = arith.constant 0.000000e+00 : f32
    %192 = vector.shape_cast %191 : vector<1x132xi1> to vector<1x132xi1>
    %193 = vector.broadcast %192 : vector<1x132xi1> to vector<8x132xi1>
    %194 = vector.broadcast %cst_50 : f32 to vector<8x132xf32>
    %195 = arith.select %193, %182, %194 : vector<8x132xi1>, vector<8x132xf32>
    %c3 = arith.constant 3 : index
    %c0_51 = arith.constant 0 : index
    %c0_52 = arith.constant 0 : index
    %196 = vector.load %arg6[%c3, %c0_51, %c0_52] : memref<4x8x5xf32, #tpu.memory_space<vmem>>, vector<1x8x5xf32>
    %197 = vector.shape_cast %196 : vector<1x8x5xf32> to vector<8x5xf32>
    %c3_53 = arith.constant 3 : index
    %c0_54 = arith.constant 0 : index
    %c0_55 = arith.constant 0 : index
    %198 = vector.load %arg7[%c3_53, %c0_54, %c0_55] : memref<4x8x8xbf16, #tpu.memory_space<vmem>>, vector<1x8x8xbf16>
    %199 = vector.shape_cast %198 : vector<1x8x8xbf16> to vector<8x8xbf16>
    %c3_56 = arith.constant 3 : index
    %c0_57 = arith.constant 0 : index
    %c0_58 = arith.constant 0 : index
    %200 = vector.load %arg8[%c3_56, %c0_57, %c0_58] : memref<4x8x1xf32, #tpu.memory_space<vmem>>, vector<1x8x1xf32>
    %201 = vector.shape_cast %200 : vector<1x8x1xf32> to vector<8x1xf32>
    %202 = vector.extract_strided_slice %197 {offsets = [0, 0], sizes = [8, 1], strides = [1, 1]} : vector<8x5xf32> to vector<8x1xf32>
    %203 = vector.extract_strided_slice %195 {offsets = [0, 0], sizes = [8, 128], strides = [1, 1]} : vector<8x132xf32> to vector<8x128xf32>
    %204 = vector.broadcast %202 : vector<8x1xf32> to vector<8x128xf32>
    %205 = arith.mulf %204, %203 : vector<8x128xf32>
    %206 = vector.extract_strided_slice %197 {offsets = [0, 1], sizes = [8, 1], strides = [1, 1]} : vector<8x5xf32> to vector<8x1xf32>
    %207 = vector.extract_strided_slice %195 {offsets = [0, 1], sizes = [8, 128], strides = [1, 1]} : vector<8x132xf32> to vector<8x128xf32>
    %208 = vector.broadcast %206 : vector<8x1xf32> to vector<8x128xf32>
    %209 = arith.mulf %208, %207 : vector<8x128xf32>
    %210 = arith.addf %205, %209 : vector<8x128xf32>
    %211 = vector.extract_strided_slice %197 {offsets = [0, 2], sizes = [8, 1], strides = [1, 1]} : vector<8x5xf32> to vector<8x1xf32>
    %212 = vector.extract_strided_slice %195 {offsets = [0, 2], sizes = [8, 128], strides = [1, 1]} : vector<8x132xf32> to vector<8x128xf32>
    %213 = vector.broadcast %211 : vector<8x1xf32> to vector<8x128xf32>
    %214 = arith.mulf %213, %212 : vector<8x128xf32>
    %215 = arith.addf %210, %214 : vector<8x128xf32>
    %216 = vector.extract_strided_slice %197 {offsets = [0, 3], sizes = [8, 1], strides = [1, 1]} : vector<8x5xf32> to vector<8x1xf32>
    %217 = vector.extract_strided_slice %195 {offsets = [0, 3], sizes = [8, 128], strides = [1, 1]} : vector<8x132xf32> to vector<8x128xf32>
    %218 = vector.broadcast %216 : vector<8x1xf32> to vector<8x128xf32>
    %219 = arith.mulf %218, %217 : vector<8x128xf32>
    %220 = arith.addf %215, %219 : vector<8x128xf32>
    %221 = vector.extract_strided_slice %197 {offsets = [0, 4], sizes = [8, 1], strides = [1, 1]} : vector<8x5xf32> to vector<8x1xf32>
    %222 = vector.extract_strided_slice %195 {offsets = [0, 4], sizes = [8, 128], strides = [1, 1]} : vector<8x132xf32> to vector<8x128xf32>
    %223 = vector.broadcast %221 : vector<8x1xf32> to vector<8x128xf32>
    %224 = arith.mulf %223, %222 : vector<8x128xf32>
    %225 = arith.addf %220, %224 : vector<8x128xf32>
    %226 = arith.truncf %225 : vector<8x128xf32> to vector<8x128xbf16>
    %cst_59 = arith.constant dense<0.000000e+00> : vector<8x128xf32>
    %227 = tpu.matmul %199, %226, %cst_59 {dimension_numbers = #tpu.dot_dimension_numbers<[1], [0], [0], [1], [0, 0, 1, 1], [], []>} : vector<8x8xbf16>, vector<8x128xbf16>, vector<8x128xf32> -> vector<8x128xf32>
    %228 = vector.broadcast %201 : vector<8x1xf32> to vector<8x128xf32>
    %229 = arith.addf %227, %228 : vector<8x128xf32>
    %230 = vector.extract_strided_slice %2 {offsets = [0, 10], sizes = [4, 128], strides = [1, 1]} : vector<4x148xf32> to vector<4x128xf32>
    %c0_60 = arith.constant 0 : index
    %c0_61 = arith.constant 0 : index
    %231 = vector.load %arg9[%c0_60, %c0_61] : memref<8x4xbf16, #tpu.memory_space<vmem>>, vector<8x4xbf16>
    %232 = arith.truncf %230 : vector<4x128xf32> to vector<4x128xbf16>
    %cst_62 = arith.constant dense<0.000000e+00> : vector<8x128xf32>
    %233 = tpu.matmul %231, %232, %cst_62 {dimension_numbers = #tpu.dot_dimension_numbers<[1], [0], [0], [1], [0, 0, 1, 1], [], []>} : vector<8x4xbf16>, vector<4x128xbf16>, vector<8x128xf32> -> vector<8x128xf32>
    %c0_63 = arith.constant 0 : index
    %c0_64 = arith.constant 0 : index
    %234 = vector.load %arg10[%c0_63, %c0_64] : memref<8x1xf32, #tpu.memory_space<vmem>>, vector<8x1xf32>
    %235 = vector.broadcast %234 : vector<8x1xf32> to vector<8x128xf32>
    %236 = arith.addf %233, %235 : vector<8x128xf32>
    %237 = arith.addf %229, %236 : vector<8x128xf32>
    %cst_65 = arith.constant 0.000000e+00 : f32
    %238 = vector.broadcast %cst_65 : f32 to vector<8x128xf32>
    %239 = arith.maximumf %237, %238 : vector<8x128xf32>
    %c0_66 = arith.constant 0 : index
    %c0_67 = arith.constant 0 : index
    %c0_68 = arith.constant 0 : index
    %240 = vector.load %arg11[%c0_66, %c0_67, %c0_68] : memref<1x8x128xf32, #tpu.memory_space<vmem>>, vector<1x8x128xf32>
    %241 = vector.shape_cast %240 : vector<1x8x128xf32> to vector<8x128xf32>
    %242 = vector.shape_cast %239 : vector<8x128xf32> to vector<1x8x128xf32>
    tpu.vector_store %arg11[%c0_66, %c0_67, %c0_68], %242 {strides = array<i32>} : memref<1x8x128xf32, #tpu.memory_space<vmem>>, vector<1x8x128xf32>,
    return
  }
  func.func @transform_0(%arg0: i32, %arg1: i32) -> (i32, i32, i32, i32) {
    %c0_i32 = arith.constant 0 : i32
    %c0_i32_0 = arith.constant 0 : i32
    %c0_i32_1 = arith.constant 0 : i32
    return %arg0, %arg1, %c0_i32, %c0_i32_0 : i32, i32, i32, i32
  }
  func.func @transform_1(%arg0: i32, %arg1: i32) -> (i32, i32) {
    %c0_i32 = arith.constant 0 : i32
    %c0_i32_0 = arith.constant 0 : i32
    %c0_i32_1 = arith.constant 0 : i32
    return %c0_i32, %c0_i32_0 : i32, i32
  }
  func.func @transform_2(%arg0: i32, %arg1: i32) -> (i32, i32) {
    %c0_i32 = arith.constant 0 : i32
    %c0_i32_0 = arith.constant 0 : i32
    %c0_i32_1 = arith.constant 0 : i32
    return %c0_i32, %c0_i32_0 : i32, i32
  }
  func.func @transform_3(%arg0: i32, %arg1: i32) -> (i32, i32) {
    %c0_i32 = arith.constant 0 : i32
    %c0_i32_0 = arith.constant 0 : i32
    %c0_i32_1 = arith.constant 0 : i32
    return %c0_i32, %c0_i32_0 : i32, i32
  }
  func.func @transform_4(%arg0: i32, %arg1: i32) -> (i32, i32, i32) {
    %c0_i32 = arith.constant 0 : i32
    %c0_i32_0 = arith.constant 0 : i32
    %c0_i32_1 = arith.constant 0 : i32
    %c0_i32_2 = arith.constant 0 : i32
    return %c0_i32, %c0_i32_0, %c0_i32_1 : i32, i32, i32
  }
  func.func @transform_5(%arg0: i32, %arg1: i32) -> (i32, i32, i32) {
    %c0_i32 = arith.constant 0 : i32
    %c0_i32_0 = arith.constant 0 : i32
    %c0_i32_1 = arith.constant 0 : i32
    %c0_i32_2 = arith.constant 0 : i32
    return %c0_i32, %c0_i32_0, %c0_i32_1 : i32, i32, i32
  }
  func.func @transform_6(%arg0: i32, %arg1: i32) -> (i32, i32, i32) {
    %c0_i32 = arith.constant 0 : i32
    %c0_i32_0 = arith.constant 0 : i32
    %c0_i32_1 = arith.constant 0 : i32
    %c0_i32_2 = arith.constant 0 : i32
    return %c0_i32, %c0_i32_0, %c0_i32_1 : i32, i32, i32
  }
  func.func @transform_7(%arg0: i32, %arg1: i32) -> (i32, i32) {
    %c0_i32 = arith.constant 0 : i32
    %c0_i32_0 = arith.constant 0 : i32
    %c0_i32_1 = arith.constant 0 : i32
    return %c0_i32, %c0_i32_0 : i32, i32
  }
  func.func @transform_8(%arg0: i32, %arg1: i32) -> (i32, i32) {
    %c0_i32 = arith.constant 0 : i32
    %c0_i32_0 = arith.constant 0 : i32
    %c0_i32_1 = arith.constant 0 : i32
    return %c0_i32, %c0_i32_0 : i32, i32
  }
  func.func @transform_9(%arg0: i32, %arg1: i32) -> (i32, i32, i32) {
    %c0_i32 = arith.constant 0 : i32
    %c0_i32_0 = arith.constant 0 : i32
    return %arg0, %c0_i32, %arg1 : i32, i32, i32
  }
}

</mosaic_0001>

<llo_original>
// kernel: tpu_custom_call.1
$region0: #{tpu_custom_call.1}
  #allocation0 [shape = 'u32[]', space=smem, size = 0x4, offset = 0x4, fixed_abs, tag = 'smem constant byte address 0x4 - core index']
  #allocation1 [shape = 'u32[144,128]{1,0:T(1,128)}', space=vmem, size = 0x12000, scoped, tag = 'internal scratch']
  %s0 = inlined_call_operand.vmem [shape: f32[2,1,4,148], index: 0, kind: input, shape index: {}]
  %s1 = inlined_call_operand.vmem [shape: f32[4,5], index: 1, kind: input, shape index: {}]
  %s2 = inlined_call_operand.vmem [shape: bf16[8,4], index: 2, kind: input, shape index: {}]
  %s3 = inlined_call_operand.vmem [shape: f32[8,1], index: 3, kind: input, shape index: {}]
  %s4 = inlined_call_operand.vmem [shape: f32[4,8,5], index: 4, kind: input, shape index: {}]
  %s5 = inlined_call_operand.vmem [shape: bf16[4,8,8], index: 5, kind: input, shape index: {}]
  %s6 = inlined_call_operand.vmem [shape: f32[4,8,1], index: 6, kind: input, shape index: {}]
  %s7 = inlined_call_operand.vmem [shape: bf16[8,4], index: 7, kind: input, shape index: {}]
  %s8 = inlined_call_operand.vmem [shape: f32[8,1], index: 8, kind: input, shape index: {}]
  %s9 = inlined_call_operand.hbm [shape: f32[2,8,128], index: 9, kind: output, shape index: {}]
  %s10 = sld [smem:[#allocation0]]
  $region69: #{tpu_custom_call.1} parent=0
    _
  %s12 = ssub.s32 1, %s10
  %s13 = scalar_select 0, %s12, %s10
  $region1: #{tpu_custom_call.1} parent=0
    #allocation2 [shape = 'u8[8192]{0}', space=vmem, size = 0x2000, scoped, tag = 'output window, operand 0']
    #allocation3 [shape = 's32[2]{0}', space=sflag, size = 0x8, scoped, tag = 'scoped memory for tpu_custom_call.1']
    %14 = vsyncpa [#allocation3], 0
    %s15 = scalar_lea.sflag [#allocation3], 1
    %16 = vsyncpa %s15, 0
    loop: start=0, step=1, limit=4
    $region2: #{tpu_custom_call.1} parent=1 // loop_pre_header
      _
    $region3: #{tpu_custom_call.1} parent=1 // loop_header
      %s18 = sphi 0, %s22
      %p19 = scmp.ge.s32.totalorder %s18, 4
      %s25 = sphi 0, %s37
      %s26 = sphi 0, %s33
      %s27 = sphi 0, %s25
      %s28 = sphi 0, %s26
      %s29 = sphi 0, %s27
      %s30 = sphi 0, %s28
      %s42 = sphi 0, %s44
      %s45 = sphi 0, %s42
      %s46 = sphi 0, %s45
      %s62 = sphi 0, %s46
      %s66 = sphi 0, %s66
      %s68 = sphi 0, %s66
      %s69 = sphi 0, %s68
      %s83 = sphi 0, %s69
      %s87 = sphi 0, %s87
      %s89 = sphi 0, %s87
      %s90 = sphi 0, %s89
      %s104 = sphi 0, %s90
      %s108 = sphi 0, %s108
      %s110 = sphi 0, %s108
      %s111 = sphi 0, %s110
      %s125 = sphi 0, %s111
      %s129 = sphi 0, %s129
      %s131 = sphi 0, %s129
      %s132 = sphi 0, %s131
      %s146 = sphi 0, %s132
      %s150 = sphi 0, %s150
      %s152 = sphi 0, %s150
      %s153 = sphi 0, %s152
      %s167 = sphi 0, %s153
      %s171 = sphi 0, %s171
      %s173 = sphi 0, %s171
      %s174 = sphi 0, %s173
      %s188 = sphi 0, %s174
      %s192 = sphi 0, %s192
      %s194 = sphi 0, %s192
      %s195 = sphi 0, %s194
      %s209 = sphi 0, %s195
      %s213 = sphi 0, %s213
      %s215 = sphi 0, %s213
      %s216 = sphi 0, %s215
      %s230 = sphi 0, %s216
      %s238 = sphi 0, %s240
      %s241 = sphi 0, %s238
      %s242 = sphi 0, %s241
      %s258 = sphi 0, %s242
    $region4: #{tpu_custom_call.1} parent=1 // loop_header_branch
      %21 = sbr.rel (%p19) target = $region8
    $region5: #{tpu_custom_call.1} parent=1 // loop_body
      %s23 = ssub.s32 %s18, 1
      %s24 = ssub.s32 %s18, 2
      %s31 = sadd.s32 1, %s26
      %p32 = scmp.ge.s32.totalorder %s31, 1
      %s33 = scalar_select %p32, 0, %s31
      %s34 = sadd.s32 1, %s25
      %s35 = scalar_select %p32, %s34, %s25
      %p36 = scmp.ge.s32.totalorder %s35, 2
      %s37 = scalar_select %p36, 0, %s35
      %s38 = ssub.s32 %s25, %s37
      %s39 = ssub.s32 %s26, %s33
      %s40 = sor.u32 %s38, %s39
      %p41 = scmp.eq.s32.totalorder %s40, 0
      %s43 = sadd.s32 %s42, 1
      %s44 = scalar_select %p41, %s42, %s43
      %p47 = pneg %p41
      %p48 = scmp.eq.s32.totalorder %s18, 1
      %p49 = por %p47, %p48
      %p50 = scmp.ne.s32.totalorder %s42, %s45
      %p51 = scmp.eq.s32.totalorder %s18, 0
      %p52 = por %p50, %p51
      %p53 = scmp.ne.s32.totalorder %s42, %s45
      %p54 = scmp.eq.s32.totalorder %s23, 1
      %p55 = por %p53, %p54
      %p56 = scmp.ne.s32.totalorder %s45, %s46
      %p57 = scmp.eq.s32.totalorder %s23, 0
      %p58 = por %p56, %p57
      %p59 = scmp.ne.s32.totalorder %s45, %s46
      %p60 = scmp.eq.s32.totalorder %s24, 1
      %p61 = por %p59, %p60
      %p63 = scmp.ne.s32.totalorder %s46, %s62
      %p64 = scmp.eq.s32.totalorder %s24, 0
      %p65 = por %p63, %p64
      %s67 = sadd.s32 %s66, 1
      %p70 = scmp.eq.s32.totalorder %s18, 1
      %p71 = scmp.ne.s32.totalorder %s66, %s68
      %p72 = scmp.eq.s32.totalorder %s18, 0
      %p73 = por %p71, %p72
      %p74 = scmp.ne.s32.totalorder %s66, %s68
      %p75 = scmp.eq.s32.totalorder %s23, 1
      %p76 = por %p74, %p75
      %p77 = scmp.ne.s32.totalorder %s68, %s69
      %p78 = scmp.eq.s32.totalorder %s23, 0
      %p79 = por %p77, %p78
      %p80 = scmp.ne.s32.totalorder %s68, %s69
      %p81 = scmp.eq.s32.totalorder %s24, 1
      %p82 = por %p80, %p81
      %p84 = scmp.ne.s32.totalorder %s69, %s83
      %p85 = scmp.eq.s32.totalorder %s24, 0
      %p86 = por %p84, %p85
      %s88 = sadd.s32 %s87, 1
      %p91 = scmp.eq.s32.totalorder %s18, 1
      %p92 = scmp.ne.s32.totalorder %s87, %s89
      %p93 = scmp.eq.s32.totalorder %s18, 0
      %p94 = por %p92, %p93
      %p95 = scmp.ne.s32.totalorder %s87, %s89
      %p96 = scmp.eq.s32.totalorder %s23, 1
      %p97 = por %p95, %p96
      %p98 = scmp.ne.s32.totalorder %s89, %s90
      %p99 = scmp.eq.s32.totalorder %s23, 0
      %p100 = por %p98, %p99
      %p101 = scmp.ne.s32.totalorder %s89, %s90
      %p102 = scmp.eq.s32.totalorder %s24, 1
      %p103 = por %p101, %p102
      %p105 = scmp.ne.s32.totalorder %s90, %s104
      %p106 = scmp.eq.s32.totalorder %s24, 0
      %p107 = por %p105, %p106
      %s109 = sadd.s32 %s108, 1
      %p112 = scmp.eq.s32.totalorder %s18, 1
      %p113 = scmp.ne.s32.totalorder %s108, %s110
      %p114 = scmp.eq.s32.totalorder %s18, 0
      %p115 = por %p113, %p114
      %p116 = scmp.ne.s32.totalorder %s108, %s110
      %p117 = scmp.eq.s32.totalorder %s23, 1
      %p118 = por %p116, %p117
      %p119 = scmp.ne.s32.totalorder %s110, %s111
      %p120 = scmp.eq.s32.totalorder %s23, 0
      %p121 = por %p119, %p120
      %p122 = scmp.ne.s32.totalorder %s110, %s111
      %p123 = scmp.eq.s32.totalorder %s24, 1
      %p124 = por %p122, %p123
      %p126 = scmp.ne.s32.totalorder %s111, %s125
      %p127 = scmp.eq.s32.totalorder %s24, 0
      %p128 = por %p126, %p127
      %s130 = sadd.s32 %s129, 1
      %p133 = scmp.eq.s32.totalorder %s18, 1
      %p134 = scmp.ne.s32.totalorder %s129, %s131
      %p135 = scmp.eq.s32.totalorder %s18, 0
      %p136 = por %p134, %p135
      %p137 = scmp.ne.s32.totalorder %s129, %s131
      %p138 = scmp.eq.s32.totalorder %s23, 1
      %p139 = por %p137, %p138
      %p140 = scmp.ne.s32.totalorder %s131, %s132
      %p141 = scmp.eq.s32.totalorder %s23, 0
      %p142 = por %p140, %p141
      %p143 = scmp.ne.s32.totalorder %s131, %s132
      %p144 = scmp.eq.s32.totalorder %s24, 1
      %p145 = por %p143, %p144
      %p147 = scmp.ne.s32.totalorder %s132, %s146
      %p148 = scmp.eq.s32.totalorder %s24, 0
      %p149 = por %p147, %p148
      %s151 = sadd.s32 %s150, 1
      %p154 = scmp.eq.s32.totalorder %s18, 1
      %p155 = scmp.ne.s32.totalorder %s150, %s152
      %p156 = scmp.eq.s32.totalorder %s18, 0
      %p157 = por %p155, %p156
      %p158 = scmp.ne.s32.totalorder %s150, %s152
      %p159 = scmp.eq.s32.totalorder %s23, 1
      %p160 = por %p158, %p159
      %p161 = scmp.ne.s32.totalorder %s152, %s153
      %p162 = scmp.eq.s32.totalorder %s23, 0
      %p163 = por %p161, %p162
      %p164 = scmp.ne.s32.totalorder %s152, %s153
      %p165 = scmp.eq.s32.totalorder %s24, 1
      %p166 = por %p164, %p165
      %p168 = scmp.ne.s32.totalorder %s153, %s167
      %p169 = scmp.eq.s32.totalorder %s24, 0
      %p170 = por %p168, %p169
      %s172 = sadd.s32 %s171, 1
      %p175 = scmp.eq.s32.totalorder %s18, 1
      %p176 = scmp.ne.s32.totalorder %s171, %s173
      %p177 = scmp.eq.s32.totalorder %s18, 0
      %p178 = por %p176, %p177
      %p179 = scmp.ne.s32.totalorder %s171, %s173
      %p180 = scmp.eq.s32.totalorder %s23, 1
      %p181 = por %p179, %p180
      %p182 = scmp.ne.s32.totalorder %s173, %s174
      %p183 = scmp.eq.s32.totalorder %s23, 0
      %p184 = por %p182, %p183
      %p185 = scmp.ne.s32.totalorder %s173, %s174
      %p186 = scmp.eq.s32.totalorder %s24, 1
      %p187 = por %p185, %p186
      %p189 = scmp.ne.s32.totalorder %s174, %s188
      %p190 = scmp.eq.s32.totalorder %s24, 0
      %p191 = por %p189, %p190
      %s193 = sadd.s32 %s192, 1
      %p196 = scmp.eq.s32.totalorder %s18, 1
      %p197 = scmp.ne.s32.totalorder %s192, %s194
      %p198 = scmp.eq.s32.totalorder %s18, 0
      %p199 = por %p197, %p198
      %p200 = scmp.ne.s32.totalorder %s192, %s194
      %p201 = scmp.eq.s32.totalorder %s23, 1
      %p202 = por %p200, %p201
      %p203 = scmp.ne.s32.totalorder %s194, %s195
      %p204 = scmp.eq.s32.totalorder %s23, 0
      %p205 = por %p203, %p204
      %p206 = scmp.ne.s32.totalorder %s194, %s195
      %p207 = scmp.eq.s32.totalorder %s24, 1
      %p208 = por %p206, %p207
      %p210 = scmp.ne.s32.totalorder %s195, %s209
      %p211 = scmp.eq.s32.totalorder %s24, 0
      %p212 = por %p210, %p211
      %s214 = sadd.s32 %s213, 1
      %p217 = scmp.eq.s32.totalorder %s18, 1
      %p218 = scmp.ne.s32.totalorder %s213, %s215
      %p219 = scmp.eq.s32.totalorder %s18, 0
      %p220 = por %p218, %p219
      %p221 = scmp.ne.s32.totalorder %s213, %s215
      %p222 = scmp.eq.s32.totalorder %s23, 1
      %p223 = por %p221, %p222
      %p224 = scmp.ne.s32.totalorder %s215, %s216
      %p225 = scmp.eq.s32.totalorder %s23, 0
      %p226 = por %p224, %p225
      %p227 = scmp.ne.s32.totalorder %s215, %s216
      %p228 = scmp.eq.s32.totalorder %s24, 1
      %p229 = por %p227, %p228
      %p231 = scmp.ne.s32.totalorder %s216, %s230
      %p232 = scmp.eq.s32.totalorder %s24, 0
      %p233 = por %p231, %p232
      %s234 = ssub.s32 %s25, %s37
      %s235 = ssub.s32 %s26, %s33
      %s236 = sor.u32 %s234, %s235
      %p237 = scmp.eq.s32.totalorder %s236, 0
      %s239 = sadd.s32 %s238, 1
      %s240 = scalar_select %p237, %s238, %s239
      %p243 = pneg %p237
      %p244 = scmp.eq.s32.totalorder %s18, 1
      %p245 = por %p243, %p244
      %p246 = scmp.ne.s32.totalorder %s238, %s241
      %p247 = scmp.eq.s32.totalorder %s18, 0
      %p248 = por %p246, %p247
      %p249 = scmp.ne.s32.totalorder %s238, %s241
      %p250 = scmp.eq.s32.totalorder %s23, 1
      %p251 = por %p249, %p250
      %p252 = scmp.ne.s32.totalorder %s241, %s242
      %p253 = scmp.eq.s32.totalorder %s23, 0
      %p254 = por %p252, %p253
      %p255 = scmp.ne.s32.totalorder %s241, %s242
      %p256 = scmp.eq.s32.totalorder %s24, 1
      %p257 = por %p255, %p256
      %p259 = scmp.ne.s32.totalorder %s242, %s258
      %p260 = scmp.eq.s32.totalorder %s24, 0
      %p261 = por %p259, %p260
      %p262 = scmp.le.s32.totalorder 1, %s18
      %p263 = scmp.lt.s32.totalorder %s18, 3
      %p264 = pnand %p262, %p263
      %p265 = pneg %p264
      // Predicated region
      $region9: #{tpu_custom_call.1} parent=5 // pred_check
        _
      $region10: #{tpu_custom_call.1} parent=5 // pred_check_branch
        %267 = sbr.rel (%p264) target = $region12
      $region11: #{tpu_custom_call.1} parent=5 // pred_region
        %s268 = ssub.s32 %s18, 1
        // Predicated region
        $region13: #{tpu_custom_call.1} parent=11 // pred_check
          %p269 = pneg %p79
        $region14: #{tpu_custom_call.1} parent=11 // pred_check_branch
          %271 = sbr.rel (%p269) target = $region16
        $region15: #{tpu_custom_call.1} parent=11 // pred_region
          _
        $region16: #{tpu_custom_call.1} parent=11 // pred_fallthru
          _
        // Predicated region
        $region17: #{tpu_custom_call.1} parent=11 // pred_check
          %p272 = pneg %p100
        $region18: #{tpu_custom_call.1} parent=11 // pred_check_branch
          %274 = sbr.rel (%p272) target = $region20
        $region19: #{tpu_custom_call.1} parent=11 // pred_region
          _
        $region20: #{tpu_custom_call.1} parent=11 // pred_fallthru
          _
        // Predicated region
        $region21: #{tpu_custom_call.1} parent=11 // pred_check
          %p275 = pneg %p121
        $region22: #{tpu_custom_call.1} parent=11 // pred_check_branch
          %277 = sbr.rel (%p275) target = $region24
        $region23: #{tpu_custom_call.1} parent=11 // pred_region
          _
        $region24: #{tpu_custom_call.1} parent=11 // pred_fallthru
          _
        // Predicated region
        $region25: #{tpu_custom_call.1} parent=11 // pred_check
          %p278 = pneg %p142
        $region26: #{tpu_custom_call.1} parent=11 // pred_check_branch
          %280 = sbr.rel (%p278) target = $region28
        $region27: #{tpu_custom_call.1} parent=11 // pred_region
          _
        $region28: #{tpu_custom_call.1} parent=11 // pred_fallthru
          _
        // Predicated region
        $region29: #{tpu_custom_call.1} parent=11 // pred_check
          %p281 = pneg %p163
        $region30: #{tpu_custom_call.1} parent=11 // pred_check_branch
          %283 = sbr.rel (%p281) target = $region32
        $region31: #{tpu_custom_call.1} parent=11 // pred_region
          _
        $region32: #{tpu_custom_call.1} parent=11 // pred_fallthru
          _
        // Predicated region
        $region33: #{tpu_custom_call.1} parent=11 // pred_check
          %p284 = pneg %p184
        $region34: #{tpu_custom_call.1} parent=11 // pred_check_branch
          %286 = sbr.rel (%p284) target = $region36
        $region35: #{tpu_custom_call.1} parent=11 // pred_region
          _
        $region36: #{tpu_custom_call.1} parent=11 // pred_fallthru
          _
        // Predicated region
        $region37: #{tpu_custom_call.1} parent=11 // pred_check
          %p287 = pneg %p205
        $region38: #{tpu_custom_call.1} parent=11 // pred_check_branch
          %289 = sbr.rel (%p287) target = $region40
        $region39: #{tpu_custom_call.1} parent=11 // pred_region
          _
        $region40: #{tpu_custom_call.1} parent=11 // pred_fallthru
          _
        // Predicated region
        $region41: #{tpu_custom_call.1} parent=11 // pred_check
          %p290 = pneg %p226
        $region42: #{tpu_custom_call.1} parent=11 // pred_check_branch
          %292 = sbr.rel (%p290) target = $region44
        $region43: #{tpu_custom_call.1} parent=11 // pred_region
          _
        $region44: #{tpu_custom_call.1} parent=11 // pred_fallthru
          _
      $region12: #{tpu_custom_call.1} parent=5 // pred_fallthru
        _
      %p293 = scmp.lt.s32.totalorder %s18, 2
      // Predicated region
      $region45: #{tpu_custom_call.1} parent=5 // pred_check
        %p294 = pneg %p293
      $region46: #{tpu_custom_call.1} parent=5 // pred_check_branch
        %296 = sbr.rel (%p294) target = $region48
      $region47: #{tpu_custom_call.1} parent=5 // pred_region
        // Predicated region
        $region49: #{tpu_custom_call.1} parent=47 // pred_check
          %p297 = pneg %p52
        $region50: #{tpu_custom_call.1} parent=47 // pred_check_branch
          %299 = sbr.rel (%p297) target = $region52
        $region51: #{tpu_custom_call.1} parent=47 // pred_region
          %p300 = scmp.lt.s32.totalorder %s25, 1
          %s301 = scalar_select %p300, %s25, 1
          %p302 = scmp.lt.s32.totalorder %s26, 0
          %s303 = scalar_select %p302, %s26, 0
          %s304 = smul.addr %s303, 2
          %s305 = smul.addr %s301, 2
          %s306 = sadd.s32 %s304, %s305
          %s307 = smul.addr %s306, 4
          %s308 = scalar_lea.vmem %s0, %s307
        $region52: #{tpu_custom_call.1} parent=47 // pred_fallthru
          _
      $region48: #{tpu_custom_call.1} parent=5 // pred_fallthru
        _
      %p309 = scmp.le.s32.totalorder 1, %s18
      %p310 = scmp.lt.s32.totalorder %s18, 3
      %p311 = pnand %p309, %p310
      %p312 = pneg %p311
      // Predicated region
      $region53: #{tpu_custom_call.1} parent=5 // pred_check
        _
      $region54: #{tpu_custom_call.1} parent=5 // pred_check_branch
        %314 = sbr.rel (%p311) target = $region56
      $region55: #{tpu_custom_call.1} parent=5 // pred_region
        %s315 = ssub.s32 %s18, 1
        %p316 = scmp.lt.s32.totalorder %s27, 1
        %s317 = scalar_select %p316, %s27, 1
        %p318 = scmp.lt.s32.totalorder %s28, 0
        %s319 = scalar_select %p318, %s28, 0
        %s320 = smul.addr %s319, 2
        %s321 = smul.addr %s317, 2
        %s322 = sadd.s32 %s320, %s321
        %s323 = smul.addr %s322, 4
        %s324 = scalar_lea.vmem %s0, %s323
        %p325 = pneg %p58
        %p326 = pneg %p55
        %p327 = pneg %p79
        %p328 = pneg %p76
        %p329 = pneg %p100
        %p330 = pneg %p97
        %p331 = pneg %p121
        %p332 = pneg %p118
        %p333 = pneg %p142
        %p334 = pneg %p139
        %p335 = pneg %p163
        %p336 = pneg %p160
        %p337 = pneg %p184
        %p338 = pneg %p181
        %p339 = pneg %p205
        %p340 = pneg %p202
        %p341 = pneg %p226
        %p342 = pneg %p223
        %p343 = pneg %p254
        %p344 = pneg %p251
        %s345 = sand.u32 %s241, 1
        %s346 = scalar_lea.sflag [#allocation3], %s345
        %s347 = sand.u32 %s241, 1
        %s348 = smul.addr %s347, 8
        %s349 = scalar_lea.vmem [#allocation2], %s348
        %p350 = scmp.lt.s32.totalorder %s27, 1
        %s351 = scalar_select %p350, %s27, 1
        %p352 = scmp.lt.s32.totalorder %s28, 0
        %s353 = scalar_select %p352, %s28, 0
        %s354 = smul.addr %s353, 2
        %s355 = smul.addr %s351, 2
        %s356 = sadd.s32 %s354, %s355
        %s357 = smul.addr %s356, 4
        %s358 = scalar_lea.vmem %s0, %s357
        %s360 = smul.u32 %s28, 128
        %v361 = vld [vmem:[%s358] sm:$0xff]
        %v362 = vld [vmem:[%s1] sm:$0xf]
        %v363 = vld [vmem:[%s2] sm:$0xf]
        %v364 = vld [vmem:[%s3] sm:$0xff]
        %366 = vset.pattern.permute.xlu0 0
        %367 = vperm.xlu0 %366, %v362
        %v368 = vpop.permute.xlu0 %367
        %v371 = vcombine.high %v361, %v361
        %v373 = vmul.f32 %v368, %v361
        %v374 = vmul.f32 %v368, %v371
        %375 = vset.pattern.permute.xlu0 1
        %376 = vperm.xlu0 %375, %v362
        %v377 = vpop.permute.xlu0 %376
        %379 = vrot.lane.b32.xlu0 %v361, 127
        %v380 = vpop.permute.xlu0 %379
        %381 = vrot.lane.b32.xlu0 %v371, 127
        %v382 = vpop.permute.xlu0 %381
        %vm383 = vcmask 1039360
        %v384 = vsel %vm383, %v380, %v382
        %v387 = vmul.f32 %v377, %v384
        %v388 = vmul.f32 %v377, %v382
        %v389 = vadd.f32 %v373, %v387
        %v390 = vadd.f32 %v374, %v388
        %391 = vset.pattern.permute.xlu0 2
        %392 = vperm.xlu0 %391, %v362
        %v393 = vpop.permute.xlu0 %392
        %395 = vrot.lane.b32.xlu0 %v361, 126
        %v396 = vpop.permute.xlu0 %395
        %397 = vrot.lane.b32.xlu0 %v371, 126
        %v398 = vpop.permute.xlu0 %397
        %vm399 = vcmask 1031168
        %v400 = vsel %vm399, %v396, %v398
        %v403 = vmul.f32 %v393, %v400
        %v404 = vmul.f32 %v393, %v398
        %v405 = vadd.f32 %v389, %v403
        %v406 = vadd.f32 %v390, %v404
        %407 = vset.pattern.permute.xlu0 3
        %408 = vperm.xlu0 %407, %v362
        %v409 = vpop.permute.xlu0 %408
        %411 = vrot.lane.b32.xlu0 %v361, 125
        %v412 = vpop.permute.xlu0 %411
        %413 = vrot.lane.b32.xlu0 %v371, 125
        %v414 = vpop.permute.xlu0 %413
        %vm415 = vcmask 1022976
        %v416 = vsel %vm415, %v412, %v414
        %v419 = vmul.f32 %v409, %v416
        %v420 = vmul.f32 %v409, %v414
        %v421 = vadd.f32 %v405, %v419
        %v422 = vadd.f32 %v406, %v420
        %423 = vset.pattern.permute.xlu0 4
        %424 = vperm.xlu0 %423, %v362
        %v425 = vpop.permute.xlu0 %424
        %427 = vrot.lane.b32.xlu0 %v361, 124
        %v428 = vpop.permute.xlu0 %427
        %429 = vrot.lane.b32.xlu0 %v371, 124
        %v430 = vpop.permute.xlu0 %429
        %vm431 = vcmask 1014784
        %v432 = vsel %vm431, %v428, %v430
        %v435 = vmul.f32 %v425, %v432
        %v436 = vmul.f32 %v425, %v430
        %v437 = vadd.f32 %v421, %v435
        %v438 = vadd.f32 %v422, %v436
        %v439 = vpack.c.bf16 %v437, %v437
        %v440 = vpack.c.bf16 %v438, %v438
        %442 = vset.pattern.permute.xlu0 0
        %443 = vperm.xlu0 %442, %v364
        %v444 = vpop.permute.xlu0 %443
        %vm446 = vcmask 31744
        %v448 = vsel %vm446, %v363, 0
        %vm450 = vcmask 1041408
        %v452 = vsel %vm450, %v439, 0
        %v455 = vsel %vm450, %v440, 0
        %457 = vmatprep.subr.bf16.mxu0 0
        %458 = vmatpush1.bf16.msra.mxu0 0
        %459 = vmatprep.subr.bf16.mxu0 0
        %460 = vmatpush1.bf16.msra.mxu0 0
        %461 = vmatprep.subr.bf16.mxu0 0
        %462 = vmatpush1.bf16.msra.mxu0 0
        %463 = vmatprep.subr.bf16.mxu0 0
        %464 = vmatpush1.bf16.msra.mxu0 0
        %465 = vmatprep.subr.bf16.mxu0 0
        %466 = vmatpush1.bf16.msra.mxu0 0
        %467 = vmatprep.subr.bf16.mxu0 0
        %468 = vmatpush1.bf16.msra.mxu0 0
        %469 = vmatprep.subr.bf16.mxu0 0
        %470 = vmatpush1.bf16.msra.mxu0 0
        %471 = vmatprep.subr.bf16.mxu0 %v455
        %472 = vmatpush1.bf16.msra.mxu0 %v452
        %473 = vmatprep.subr.bf16.mxu0 0
        %474 = vmatpush2.bf16.msra.mxu0 0
        %475 = vmatprep.subr.bf16.mxu0 0
        %476 = vmatpush2.bf16.msra.mxu0 0
        %477 = vmatprep.subr.bf16.mxu0 0
        %478 = vmatpush2.bf16.msra.mxu0 0
        %479 = vmatprep.subr.bf16.mxu0 0
        %480 = vmatpush2.bf16.msra.mxu0 0
        %481 = vmatprep.subr.bf16.mxu0 0
        %482 = vmatpush2.bf16.msra.mxu0 0
        %483 = vmatprep.subr.bf16.mxu0 0
        %484 = vmatpush2.bf16.msra.mxu0 0
        %485 = vmatprep.subr.bf16.mxu0 0
        %486 = vmatpush2.bf16.msra.mxu0 0
        %487 = vmatprep.subr.bf16.mxu0 0
        %488 = vmatpush2.bf16.msra.mxu0 0
        %489 = vmatprep.mubr.bf16.mxu0 0
        %490 = vmatmul.mubr.bf16.gmra.mxu0 %v448
        %v491 = vpop.f32.mrf.mxu0
        %v492 = vadd.f32 %v444, %v491
        %v493 = vpop.f32.mrf.mxu0
        %v494 = vadd.f32 %v444, %v493
        %v495 = vpop.f32.mrf.mxu0
        %v496 = vpop.f32.mrf.mxu0
        %497 = vdwg.mxu0
        %v498 = vmax.f32 %v492, 0.0
        %v499 = vmax.f32 %v494, 0.0
        %s500 = ssub.s32 %s360, 8
        %v501 = vlaneseq
        %v502 = vand.u32 %v501, 127
        %v503 = vadd.s32 %v502, 128
        %v504 = vstv %s500
        %v505 = vadd.s32 %v504, %v502
        %v506 = vadd.s32 %v504, %v503
        %vm507 = vcmp.ge.s32.totalorder %v505, 0
        %vm508 = vcmp.ge.s32.totalorder %v506, 0
        %vm509 = vcmp.lt.s32.totalorder %v505, 16
        %vm510 = vcmp.lt.s32.totalorder %v506, 16
        %vm511 = vmand %vm507, %vm509
        %vm512 = vmand %vm508, %vm510
        %v513 = vsel %vm511, 1, 0
        %v514 = vsel %vm512, 1, 0
        %vm515 = vcmp.eq.s32.totalorder %v513, 1
        %vm516 = vcmp.eq.s32.totalorder %v514, 1
        %v517 = vsel %vm515, %v498, 0.0
        %v518 = vsel %vm516, %v499, 0.0
        %v519 = vld [vmem:[%s4] sm:$0xff]
        %v520 = vld [vmem:[%s5] sm:$0xf]
        %v521 = vld [vmem:[%s6] sm:$0xff]
        %523 = vset.pattern.permute.xlu0 0
        %524 = vperm.xlu0 %523, %v519
        %v525 = vpop.permute.xlu0 %524
        %v527 = vmul.f32 %v525, %v517
        %v528 = vmul.f32 %v525, %v518
        %529 = vset.pattern.permute.xlu0 1
        %530 = vperm.xlu0 %529, %v519
        %v531 = vpop.permute.xlu0 %530
        %v533 = vmul.f32 %v531, %v517
        %v534 = vmul.f32 %v531, %v518
        %537 = vrot.lane.b32.xlu0 %v533, 127
        %v538 = vpop.permute.xlu0 %537
        %539 = vrot.lane.b32.xlu0 %v534, 127
        %v540 = vpop.permute.xlu0 %539
        %v541 = vsel %vm383, %v538, %v540
        %v544 = vadd.f32 %v527, %v541
        %v545 = vadd.f32 %v528, %v540
        %546 = vset.pattern.permute.xlu0 2
        %547 = vperm.xlu0 %546, %v519
        %v548 = vpop.permute.xlu0 %547
        %v550 = vmul.f32 %v548, %v517
        %v551 = vmul.f32 %v548, %v518
        %554 = vrot.lane.b32.xlu0 %v550, 126
        %v555 = vpop.permute.xlu0 %554
        %556 = vrot.lane.b32.xlu0 %v551, 126
        %v557 = vpop.permute.xlu0 %556
        %v558 = vsel %vm399, %v555, %v557
        %v561 = vadd.f32 %v544, %v558
        %v562 = vadd.f32 %v545, %v557
        %563 = vset.pattern.permute.xlu0 3
        %564 = vperm.xlu0 %563, %v519
        %v565 = vpop.permute.xlu0 %564
        %v567 = vmul.f32 %v565, %v517
        %v568 = vmul.f32 %v565, %v518
        %571 = vrot.lane.b32.xlu0 %v567, 125
        %v572 = vpop.permute.xlu0 %571
        %573 = vrot.lane.b32.xlu0 %v568, 125
        %v574 = vpop.permute.xlu0 %573
        %v575 = vsel %vm415, %v572, %v574
        %v578 = vadd.f32 %v561, %v575
        %v579 = vadd.f32 %v562, %v574
        %580 = vset.pattern.permute.xlu0 4
        %581 = vperm.xlu0 %580, %v519
        %v582 = vpop.permute.xlu0 %581
        %v584 = vmul.f32 %v582, %v517
        %v585 = vmul.f32 %v582, %v518
        %588 = vrot.lane.b32.xlu0 %v584, 124
        %v589 = vpop.permute.xlu0 %588
        %590 = vrot.lane.b32.xlu0 %v585, 124
        %v591 = vpop.permute.xlu0 %590
        %v592 = vsel %vm431, %v589, %v591
        %v595 = vadd.f32 %v578, %v592
        %v596 = vadd.f32 %v579, %v591
        %v597 = vpack.c.bf16 %v595, %v595
        %v598 = vpack.c.bf16 %v596, %v596
        %600 = vset.pattern.permute.xlu0 0
        %601 = vperm.xlu0 %600, %v521
        %v602 = vpop.permute.xlu0 %601
        %vm604 = vcmask 64512
        %v606 = vsel %vm604, %v520, 0
        %vm608 = vcmask 1043456
        %v610 = vsel %vm608, %v597, 0
        %v613 = vsel %vm608, %v598, 0
        %615 = vmatprep.subr.bf16.mxu0 0
        %616 = vmatpush1.bf16.msra.mxu0 0
        %617 = vmatprep.subr.bf16.mxu0 0
        %618 = vmatpush1.bf16.msra.mxu0 0
        %619 = vmatprep.subr.bf16.mxu0 0
        %620 = vmatpush1.bf16.msra.mxu0 0
        %621 = vmatprep.subr.bf16.mxu0 0
        %622 = vmatpush1.bf16.msra.mxu0 0
        %623 = vmatprep.subr.bf16.mxu0 0
        %624 = vmatpush1.bf16.msra.mxu0 0
        %625 = vmatprep.subr.bf16.mxu0 0
        %626 = vmatpush1.bf16.msra.mxu0 0
        %627 = vmatprep.subr.bf16.mxu0 0
        %628 = vmatpush1.bf16.msra.mxu0 0
        %629 = vmatprep.subr.bf16.mxu0 %v613
        %630 = vmatpush1.bf16.msra.mxu0 %v610
        %631 = vmatprep.subr.bf16.mxu0 0
        %632 = vmatpush2.bf16.msra.mxu0 0
        %633 = vmatprep.subr.bf16.mxu0 0
        %634 = vmatpush2.bf16.msra.mxu0 0
        %635 = vmatprep.subr.bf16.mxu0 0
        %636 = vmatpush2.bf16.msra.mxu0 0
        %637 = vmatprep.subr.bf16.mxu0 0
        %638 = vmatpush2.bf16.msra.mxu0 0
        %639 = vmatprep.subr.bf16.mxu0 0
        %640 = vmatpush2.bf16.msra.mxu0 0
        %641 = vmatprep.subr.bf16.mxu0 0
        %642 = vmatpush2.bf16.msra.mxu0 0
        %643 = vmatprep.subr.bf16.mxu0 0
        %644 = vmatpush2.bf16.msra.mxu0 0
        %645 = vmatprep.subr.bf16.mxu0 0
        %646 = vmatpush2.bf16.msra.mxu0 0
        %647 = vmatprep.mubr.bf16.mxu0 0
        %648 = vmatmul.mubr.bf16.gmra.mxu0 %v606
        %v649 = vpop.f32.mrf.mxu0
        %v650 = vadd.f32 %v602, %v649
        %v651 = vpop.f32.mrf.mxu0
        %v652 = vadd.f32 %v602, %v651
        %v653 = vpop.f32.mrf.mxu0
        %v654 = vpop.f32.mrf.mxu0
        %655 = vdwg.mxu0
        %v656 = vmax.f32 %v650, 0.0
        %v657 = vmax.f32 %v652, 0.0
        %s658 = ssub.s32 %s360, 6
        %v659 = vstv %s658
        %v660 = vadd.s32 %v659, %v502
        %v661 = vadd.s32 %v659, %v503
        %vm662 = vcmp.ge.s32.totalorder %v660, 0
        %vm663 = vcmp.ge.s32.totalorder %v661, 0
        %vm664 = vcmp.lt.s32.totalorder %v660, 16
        %vm665 = vcmp.lt.s32.totalorder %v661, 16
        %vm666 = vmand %vm662, %vm664
        %vm667 = vmand %vm663, %vm665
        %v668 = vsel %vm666, 1, 0
        %v669 = vsel %vm667, 1, 0
        %vm670 = vcmp.eq.s32.totalorder %v668, 1
        %vm671 = vcmp.eq.s32.totalorder %v669, 1
        %v672 = vsel %vm670, %v656, 0.0
        %v673 = vsel %vm671, %v657, 0.0
        %s674 = scalar_lea.vmem %s4, 8
        %v675 = vld [vmem:[%s674] sm:$0xff]
        %s676 = scalar_lea.vmem %s5, 4
        %v677 = vld [vmem:[%s676] sm:$0xf]
        %s678 = scalar_lea.vmem %s6, 8
        %v679 = vld [vmem:[%s678] sm:$0xff]
        %681 = vset.pattern.permute.xlu0 0
        %682 = vperm.xlu0 %681, %v675
        %v683 = vpop.permute.xlu0 %682
        %v685 = vmul.f32 %v683, %v672
        %v686 = vmul.f32 %v683, %v673
        %687 = vset.pattern.permute.xlu0 1
        %688 = vperm.xlu0 %687, %v675
        %v689 = vpop.permute.xlu0 %688
        %v691 = vmul.f32 %v689, %v672
        %v692 = vmul.f32 %v689, %v673
        %695 = vrot.lane.b32.xlu0 %v691, 127
        %v696 = vpop.permute.xlu0 %695
        %697 = vrot.lane.b32.xlu0 %v692, 127
        %v698 = vpop.permute.xlu0 %697
        %v699 = vsel %vm383, %v696, %v698
        %v702 = vadd.f32 %v685, %v699
        %v703 = vadd.f32 %v686, %v698
        %704 = vset.pattern.permute.xlu0 2
        %705 = vperm.xlu0 %704, %v675
        %v706 = vpop.permute.xlu0 %705
        %v708 = vmul.f32 %v706, %v672
        %v709 = vmul.f32 %v706, %v673
        %712 = vrot.lane.b32.xlu0 %v708, 126
        %v713 = vpop.permute.xlu0 %712
        %714 = vrot.lane.b32.xlu0 %v709, 126
        %v715 = vpop.permute.xlu0 %714
        %v716 = vsel %vm399, %v713, %v715
        %v719 = vadd.f32 %v702, %v716
        %v720 = vadd.f32 %v703, %v715
        %721 = vset.pattern.permute.xlu0 3
        %722 = vperm.xlu0 %721, %v675
        %v723 = vpop.permute.xlu0 %722
        %v725 = vmul.f32 %v723, %v672
        %v726 = vmul.f32 %v723, %v673
        %729 = vrot.lane.b32.xlu0 %v725, 125
        %v730 = vpop.permute.xlu0 %729
        %731 = vrot.lane.b32.xlu0 %v726, 125
        %v732 = vpop.permute.xlu0 %731
        %v733 = vsel %vm415, %v730, %v732
        %v736 = vadd.f32 %v719, %v733
        %v737 = vadd.f32 %v720, %v732
        %738 = vset.pattern.permute.xlu0 4
        %739 = vperm.xlu0 %738, %v675
        %v740 = vpop.permute.xlu0 %739
        %v742 = vmul.f32 %v740, %v672
        %v743 = vmul.f32 %v740, %v673
        %746 = vrot.lane.b32.xlu0 %v742, 124
        %v747 = vpop.permute.xlu0 %746
        %748 = vrot.lane.b32.xlu0 %v743, 124
        %v749 = vpop.permute.xlu0 %748
        %v750 = vsel %vm431, %v747, %v749
        %v753 = vadd.f32 %v736, %v750
        %v754 = vadd.f32 %v737, %v749
        %v755 = vpack.c.bf16 %v753, %v753
        %v756 = vpack.c.bf16 %v754, %v754
        %758 = vset.pattern.permute.xlu0 0
        %759 = vperm.xlu0 %758, %v679
        %v760 = vpop.permute.xlu0 %759
        %v763 = vsel %vm604, %v677, 0
        %v766 = vsel %vm608, %v755, 0
        %v769 = vsel %vm608, %v756, 0
        %771 = vmatprep.subr.bf16.mxu0 0
        %772 = vmatpush1.bf16.msra.mxu0 0
        %773 = vmatprep.subr.bf16.mxu0 0
        %774 = vmatpush1.bf16.msra.mxu0 0
        %775 = vmatprep.subr.bf16.mxu0 0
        %776 = vmatpush1.bf16.msra.mxu0 0
        %777 = vmatprep.subr.bf16.mxu0 0
        %778 = vmatpush1.bf16.msra.mxu0 0
        %779 = vmatprep.subr.bf16.mxu0 0
        %780 = vmatpush1.bf16.msra.mxu0 0
        %781 = vmatprep.subr.bf16.mxu0 0
        %782 = vmatpush1.bf16.msra.mxu0 0
        %783 = vmatprep.subr.bf16.mxu0 0
        %784 = vmatpush1.bf16.msra.mxu0 0
        %785 = vmatprep.subr.bf16.mxu0 %v769
        %786 = vmatpush1.bf16.msra.mxu0 %v766
        %787 = vmatprep.subr.bf16.mxu0 0
        %788 = vmatpush2.bf16.msra.mxu0 0
        %789 = vmatprep.subr.bf16.mxu0 0
        %790 = vmatpush2.bf16.msra.mxu0 0
        %791 = vmatprep.subr.bf16.mxu0 0
        %792 = vmatpush2.bf16.msra.mxu0 0
        %793 = vmatprep.subr.bf16.mxu0 0
        %794 = vmatpush2.bf16.msra.mxu0 0
        %795 = vmatprep.subr.bf16.mxu0 0
        %796 = vmatpush2.bf16.msra.mxu0 0
        %797 = vmatprep.subr.bf16.mxu0 0
        %798 = vmatpush2.bf16.msra.mxu0 0
        %799 = vmatprep.subr.bf16.mxu0 0
        %800 = vmatpush2.bf16.msra.mxu0 0
        %801 = vmatprep.subr.bf16.mxu0 0
        %802 = vmatpush2.bf16.msra.mxu0 0
        %803 = vmatprep.mubr.bf16.mxu0 0
        %804 = vmatmul.mubr.bf16.gmra.mxu0 %v763
        %v805 = vpop.f32.mrf.mxu0
        %v806 = vadd.f32 %v760, %v805
        %v807 = vpop.f32.mrf.mxu0
        %v808 = vadd.f32 %v760, %v807
        %v809 = vpop.f32.mrf.mxu0
        %v810 = vpop.f32.mrf.mxu0
        %811 = vdwg.mxu0
        %v812 = vmax.f32 %v806, 0.0
        %v813 = vmax.f32 %v808, 0.0
        %s814 = ssub.s32 %s360, 4
        %v815 = vstv %s814
        %v816 = vadd.s32 %v815, %v502
        %v817 = vadd.s32 %v815, %v503
        %vm818 = vcmp.ge.s32.totalorder %v816, 0
        %vm819 = vcmp.ge.s32.totalorder %v817, 0
        %vm820 = vcmp.lt.s32.totalorder %v816, 16
        %vm821 = vcmp.lt.s32.totalorder %v817, 16
        %vm822 = vmand %vm818, %vm820
        %vm823 = vmand %vm819, %vm821
        %v824 = vsel %vm822, 1, 0
        %v825 = vsel %vm823, 1, 0
        %vm826 = vcmp.eq.s32.totalorder %v824, 1
        %vm827 = vcmp.eq.s32.totalorder %v825, 1
        %v828 = vsel %vm826, %v812, 0.0
        %v829 = vsel %vm827, %v813, 0.0
        %s830 = scalar_lea.vmem %s4, 16
        %v831 = vld [vmem:[%s830] sm:$0xff]
        %s832 = scalar_lea.vmem %s5, 8
        %v833 = vld [vmem:[%s832] sm:$0xf]
        %s834 = scalar_lea.vmem %s6, 16
        %v835 = vld [vmem:[%s834] sm:$0xff]
        %837 = vset.pattern.permute.xlu0 0
        %838 = vperm.xlu0 %837, %v831
        %v839 = vpop.permute.xlu0 %838
        %v841 = vmul.f32 %v839, %v828
        %v842 = vmul.f32 %v839, %v829
        %843 = vset.pattern.permute.xlu0 1
        %844 = vperm.xlu0 %843, %v831
        %v845 = vpop.permute.xlu0 %844
        %v847 = vmul.f32 %v845, %v828
        %v848 = vmul.f32 %v845, %v829
        %851 = vrot.lane.b32.xlu0 %v847, 127
        %v852 = vpop.permute.xlu0 %851
        %853 = vrot.lane.b32.xlu0 %v848, 127
        %v854 = vpop.permute.xlu0 %853
        %v855 = vsel %vm383, %v852, %v854
        %v858 = vadd.f32 %v841, %v855
        %v859 = vadd.f32 %v842, %v854
        %860 = vset.pattern.permute.xlu0 2
        %861 = vperm.xlu0 %860, %v831
        %v862 = vpop.permute.xlu0 %861
        %v864 = vmul.f32 %v862, %v828
        %v865 = vmul.f32 %v862, %v829
        %868 = vrot.lane.b32.xlu0 %v864, 126
        %v869 = vpop.permute.xlu0 %868
        %870 = vrot.lane.b32.xlu0 %v865, 126
        %v871 = vpop.permute.xlu0 %870
        %v872 = vsel %vm399, %v869, %v871
        %v875 = vadd.f32 %v858, %v872
        %v876 = vadd.f32 %v859, %v871
        %877 = vset.pattern.permute.xlu0 3
        %878 = vperm.xlu0 %877, %v831
        %v879 = vpop.permute.xlu0 %878
        %v881 = vmul.f32 %v879, %v828
        %v882 = vmul.f32 %v879, %v829
        %885 = vrot.lane.b32.xlu0 %v881, 125
        %v886 = vpop.permute.xlu0 %885
        %887 = vrot.lane.b32.xlu0 %v882, 125
        %v888 = vpop.permute.xlu0 %887
        %v889 = vsel %vm415, %v886, %v888
        %v892 = vadd.f32 %v875, %v889
        %v893 = vadd.f32 %v876, %v888
        %894 = vset.pattern.permute.xlu0 4
        %895 = vperm.xlu0 %894, %v831
        %v896 = vpop.permute.xlu0 %895
        %v898 = vmul.f32 %v896, %v828
        %v899 = vmul.f32 %v896, %v829
        %902 = vrot.lane.b32.xlu0 %v898, 124
        %v903 = vpop.permute.xlu0 %902
        %904 = vrot.lane.b32.xlu0 %v899, 124
        %v905 = vpop.permute.xlu0 %904
        %v906 = vsel %vm431, %v903, %v905
        %v909 = vadd.f32 %v892, %v906
        %v910 = vadd.f32 %v893, %v905
        %v911 = vpack.c.bf16 %v909, %v909
        %v912 = vpack.c.bf16 %v910, %v910
        %914 = vset.pattern.permute.xlu0 0
        %915 = vperm.xlu0 %914, %v835
        %v916 = vpop.permute.xlu0 %915
        %v919 = vsel %vm604, %v833, 0
        %v922 = vsel %vm608, %v911, 0
        %v925 = vsel %vm608, %v912, 0
        %927 = vmatprep.subr.bf16.mxu0 0
        %928 = vmatpush1.bf16.msra.mxu0 0
        %929 = vmatprep.subr.bf16.mxu0 0
        %930 = vmatpush1.bf16.msra.mxu0 0
        %931 = vmatprep.subr.bf16.mxu0 0
        %932 = vmatpush1.bf16.msra.mxu0 0
        %933 = vmatprep.subr.bf16.mxu0 0
        %934 = vmatpush1.bf16.msra.mxu0 0
        %935 = vmatprep.subr.bf16.mxu0 0
        %936 = vmatpush1.bf16.msra.mxu0 0
        %937 = vmatprep.subr.bf16.mxu0 0
        %938 = vmatpush1.bf16.msra.mxu0 0
        %939 = vmatprep.subr.bf16.mxu0 0
        %940 = vmatpush1.bf16.msra.mxu0 0
        %941 = vmatprep.subr.bf16.mxu0 %v925
        %942 = vmatpush1.bf16.msra.mxu0 %v922
        %943 = vmatprep.subr.bf16.mxu0 0
        %944 = vmatpush2.bf16.msra.mxu0 0
        %945 = vmatprep.subr.bf16.mxu0 0
        %946 = vmatpush2.bf16.msra.mxu0 0
        %947 = vmatprep.subr.bf16.mxu0 0
        %948 = vmatpush2.bf16.msra.mxu0 0
        %949 = vmatprep.subr.bf16.mxu0 0
        %950 = vmatpush2.bf16.msra.mxu0 0
        %951 = vmatprep.subr.bf16.mxu0 0
        %952 = vmatpush2.bf16.msra.mxu0 0
        %953 = vmatprep.subr.bf16.mxu0 0
        %954 = vmatpush2.bf16.msra.mxu0 0
        %955 = vmatprep.subr.bf16.mxu0 0
        %956 = vmatpush2.bf16.msra.mxu0 0
        %957 = vmatprep.subr.bf16.mxu0 0
        %958 = vmatpush2.bf16.msra.mxu0 0
        %959 = vmatprep.mubr.bf16.mxu0 0
        %960 = vmatmul.mubr.bf16.gmra.mxu0 %v919
        %v961 = vpop.f32.mrf.mxu0
        %v962 = vadd.f32 %v916, %v961
        %v963 = vpop.f32.mrf.mxu0
        %v964 = vadd.f32 %v916, %v963
        %v965 = vpop.f32.mrf.mxu0
        %v966 = vpop.f32.mrf.mxu0
        %967 = vdwg.mxu0
        %v968 = vmax.f32 %v962, 0.0
        %v969 = vmax.f32 %v964, 0.0
        %s970 = ssub.s32 %s360, 2
        %v971 = vstv %s970
        %v972 = vadd.s32 %v971, %v502
        %v973 = vadd.s32 %v971, %v503
        %vm974 = vcmp.ge.s32.totalorder %v972, 0
        %vm975 = vcmp.ge.s32.totalorder %v973, 0
        %vm976 = vcmp.lt.s32.totalorder %v972, 16
        %vm977 = vcmp.lt.s32.totalorder %v973, 16
        %vm978 = vmand %vm974, %vm976
        %vm979 = vmand %vm975, %vm977
        %v980 = vsel %vm978, 1, 0
        %v981 = vsel %vm979, 1, 0
        %vm982 = vcmp.eq.s32.totalorder %v980, 1
        %vm983 = vcmp.eq.s32.totalorder %v981, 1
        %v984 = vsel %vm982, %v968, 0.0
        %v985 = vsel %vm983, %v969, 0.0
        %s986 = scalar_lea.vmem %s4, 24
        %v987 = vld [vmem:[%s986] sm:$0xff]
        %s988 = scalar_lea.vmem %s5, 12
        %v989 = vld [vmem:[%s988] sm:$0xf]
        %s990 = scalar_lea.vmem %s6, 24
        %v991 = vld [vmem:[%s990] sm:$0xff]
        %993 = vset.pattern.permute.xlu0 0
        %994 = vperm.xlu0 %993, %v987
        %v995 = vpop.permute.xlu0 %994
        %v997 = vmul.f32 %v995, %v984
        %998 = vset.pattern.permute.xlu0 1
        %999 = vperm.xlu0 %998, %v987
        %v1000 = vpop.permute.xlu0 %999
        %v1002 = vmul.f32 %v1000, %v984
        %v1003 = vmul.f32 %v1000, %v985
        %1006 = vrot.lane.b32.xlu0 %v1002, 127
        %v1007 = vpop.permute.xlu0 %1006
        %1008 = vrot.lane.b32.xlu0 %v1003, 127
        %v1009 = vpop.permute.xlu0 %1008
        %v1010 = vsel %vm383, %v1007, %v1009
        %v1012 = vadd.f32 %v997, %v1010
        %1013 = vset.pattern.permute.xlu0 2
        %1014 = vperm.xlu0 %1013, %v987
        %v1015 = vpop.permute.xlu0 %1014
        %v1017 = vmul.f32 %v1015, %v984
        %v1018 = vmul.f32 %v1015, %v985
        %1021 = vrot.lane.b32.xlu0 %v1017, 126
        %v1022 = vpop.permute.xlu0 %1021
        %1023 = vrot.lane.b32.xlu0 %v1018, 126
        %v1024 = vpop.permute.xlu0 %1023
        %v1025 = vsel %vm399, %v1022, %v1024
        %v1027 = vadd.f32 %v1012, %v1025
        %1028 = vset.pattern.permute.xlu0 3
        %1029 = vperm.xlu0 %1028, %v987
        %v1030 = vpop.permute.xlu0 %1029
        %v1032 = vmul.f32 %v1030, %v984
        %v1033 = vmul.f32 %v1030, %v985
        %1036 = vrot.lane.b32.xlu0 %v1032, 125
        %v1037 = vpop.permute.xlu0 %1036
        %1038 = vrot.lane.b32.xlu0 %v1033, 125
        %v1039 = vpop.permute.xlu0 %1038
        %v1040 = vsel %vm415, %v1037, %v1039
        %v1042 = vadd.f32 %v1027, %v1040
        %1043 = vset.pattern.permute.xlu0 4
        %1044 = vperm.xlu0 %1043, %v987
        %v1045 = vpop.permute.xlu0 %1044
        %v1047 = vmul.f32 %v1045, %v984
        %v1048 = vmul.f32 %v1045, %v985
        %1051 = vrot.lane.b32.xlu0 %v1047, 124
        %v1052 = vpop.permute.xlu0 %1051
        %1053 = vrot.lane.b32.xlu0 %v1048, 124
        %v1054 = vpop.permute.xlu0 %1053
        %v1055 = vsel %vm431, %v1052, %v1054
        %v1057 = vadd.f32 %v1042, %v1055
        %v1058 = vpack.c.bf16 %v1057, %v1057
        %1060 = vset.pattern.permute.xlu0 0
        %1061 = vperm.xlu0 %1060, %v991
        %v1062 = vpop.permute.xlu0 %1061
        %v1065 = vsel %vm604, %v989, 0
        %v1068 = vsel %vm608, %v1058, 0
        %1070 = vmatprep.subr.bf16.mxu0 0
        %1071 = vmatpush1.bf16.msra.mxu0 0
        %1072 = vmatprep.subr.bf16.mxu0 0
        %1073 = vmatpush1.bf16.msra.mxu0 0
        %1074 = vmatprep.subr.bf16.mxu0 0
        %1075 = vmatpush1.bf16.msra.mxu0 0
        %1076 = vmatprep.subr.bf16.mxu0 0
        %1077 = vmatpush1.bf16.msra.mxu0 0
        %1078 = vmatprep.subr.bf16.mxu0 0
        %1079 = vmatpush1.bf16.msra.mxu0 0
        %1080 = vmatprep.subr.bf16.mxu0 0
        %1081 = vmatpush1.bf16.msra.mxu0 0
        %1082 = vmatprep.subr.bf16.mxu0 0
        %1083 = vmatpush1.bf16.msra.mxu0 0
        %1084 = vmatprep.subr.bf16.mxu0 0
        %1085 = vmatpush1.bf16.msra.mxu0 %v1068
        %1086 = vmatprep.subr.bf16.mxu0 0
        %1087 = vmatpush2.bf16.msra.mxu0 0
        %1088 = vmatprep.subr.bf16.mxu0 0
        %1089 = vmatpush2.bf16.msra.mxu0 0
        %1090 = vmatprep.subr.bf16.mxu0 0
        %1091 = vmatpush2.bf16.msra.mxu0 0
        %1092 = vmatprep.subr.bf16.mxu0 0
        %1093 = vmatpush2.bf16.msra.mxu0 0
        %1094 = vmatprep.subr.bf16.mxu0 0
        %1095 = vmatpush2.bf16.msra.mxu0 0
        %1096 = vmatprep.subr.bf16.mxu0 0
        %1097 = vmatpush2.bf16.msra.mxu0 0
        %1098 = vmatprep.subr.bf16.mxu0 0
        %1099 = vmatpush2.bf16.msra.mxu0 0
        %1100 = vmatprep.subr.bf16.mxu0 0
        %1101 = vmatpush2.bf16.msra.mxu0 0
        %1102 = vmatprep.mubr.bf16.mxu0 0
        %1103 = vmatmul.mubr.bf16.gmra.mxu0 %v1065
        %v1104 = vpop.f32.mrf.mxu0
        %v1105 = vadd.f32 %v1062, %v1104
        %v1106 = vpop.f32.mrf.mxu0
        %v1107 = vpop.f32.mrf.mxu0
        %v1108 = vpop.f32.mrf.mxu0
        %1109 = vdwg.mxu0
        %v1110 = vld [vmem:[%s7] sm:$0xf]
        %v1111 = vpack.c.bf16 %v361, %v361
        %v1112 = vpack.c.bf16 %v371, %v371
        %v1113 = vld [vmem:[%s8] sm:$0xff]
        %1115 = vset.pattern.permute.xlu0 0
        %1116 = vperm.xlu0 %1115, %v1113
        %v1117 = vpop.permute.xlu0 %1116
        %1121 = vrot.lane.b32.xlu0 %v1111, 118
        %v1122 = vpop.permute.xlu0 %1121
        %1123 = vrot.lane.b32.xlu0 %v1112, 118
        %v1124 = vpop.permute.xlu0 %1123
        %vm1125 = vcmask 965632
        %v1126 = vsel %vm1125, %v1122, %v1124
        %v1128 = vsel %vm446, %v1110, 0
        %v1131 = vsel %vm450, %v1126, 0
        %1133 = vmatprep.subr.bf16.mxu0 0
        %1134 = vmatpush1.bf16.msra.mxu0 0
        %1135 = vmatprep.subr.bf16.mxu0 0
        %1136 = vmatpush1.bf16.msra.mxu0 0
        %1137 = vmatprep.subr.bf16.mxu0 0
        %1138 = vmatpush1.bf16.msra.mxu0 0
        %1139 = vmatprep.subr.bf16.mxu0 0
        %1140 = vmatpush1.bf16.msra.mxu0 0
        %1141 = vmatprep.subr.bf16.mxu0 0
        %1142 = vmatpush1.bf16.msra.mxu0 0
        %1143 = vmatprep.subr.bf16.mxu0 0
        %1144 = vmatpush1.bf16.msra.mxu0 0
        %1145 = vmatprep.subr.bf16.mxu0 0
        %1146 = vmatpush1.bf16.msra.mxu0 0
        %1147 = vmatprep.subr.bf16.mxu0 0
        %1148 = vmatpush1.bf16.msra.mxu0 %v1131
        %1149 = vmatprep.subr.bf16.mxu0 0
        %1150 = vmatpush2.bf16.msra.mxu0 0
        %1151 = vmatprep.subr.bf16.mxu0 0
        %1152 = vmatpush2.bf16.msra.mxu0 0
        %1153 = vmatprep.subr.bf16.mxu0 0
        %1154 = vmatpush2.bf16.msra.mxu0 0
        %1155 = vmatprep.subr.bf16.mxu0 0
        %1156 = vmatpush2.bf16.msra.mxu0 0
        %1157 = vmatprep.subr.bf16.mxu0 0
        %1158 = vmatpush2.bf16.msra.mxu0 0
        %1159 = vmatprep.subr.bf16.mxu0 0
        %1160 = vmatpush2.bf16.msra.mxu0 0
        %1161 = vmatprep.subr.bf16.mxu0 0
        %1162 = vmatpush2.bf16.msra.mxu0 0
        %1163 = vmatprep.subr.bf16.mxu0 0
        %1164 = vmatpush2.bf16.msra.mxu0 0
        %1165 = vmatprep.mubr.bf16.mxu0 0
        %1166 = vmatmul.mubr.bf16.gmra.mxu0 %v1128
        %v1167 = vpop.f32.mrf.mxu0
        %v1168 = vadd.f32 %v1117, %v1167
        %v1169 = vpop.f32.mrf.mxu0
        %v1170 = vpop.f32.mrf.mxu0
        %v1171 = vpop.f32.mrf.mxu0
        %1172 = vdwg.mxu0
        %v1173 = vadd.f32 %v1105, %v1168
        %v1174 = vmax.f32 %v1173, 0.0
        %1175 = vst [vmem:[%s349] sm:$0xff] %v1174
        %s1176 = sand.u32 %s241, 1
        %s1177 = scalar_lea.sflag [#allocation3], %s1176
        %s1178 = sand.u32 %s241, 1
        %s1179 = smul.addr %s1178, 8
        %s1180 = scalar_lea.vmem [#allocation2], %s1179
        // Predicated region
        $region57: #{tpu_custom_call.1} parent=55 // pred_check
          %p1181 = pneg %p251
        $region58: #{tpu_custom_call.1} parent=55 // pred_check_branch
          %1183 = sbr.rel (%p1181) target = $region60
        $region59: #{tpu_custom_call.1} parent=55 // pred_region
          %s1185 = ssub.s32 128, 128
          %1186 = vsyncadd %s1177, %s1185
          %s1187 = sadd.s32 %s28, %s27
          %s1188 = smul.addr %s1187, 128
          %s1189 = scalar_lea.hbm %s9, %s1188
          %s1191 = sshll.u32 %s1180, 4
          %s1192 = int_to_ptr.vmem [resolvable:$true] %s1191
          %1194 = dma.vmem_to_hbm [thread:$0]  %s1192, 128, %s1189, %s1177
        $region60: #{tpu_custom_call.1} parent=55 // pred_fallthru
          _
      $region56: #{tpu_custom_call.1} parent=5 // pred_fallthru
        _
      %p1195 = scmp.le.s32.totalorder 2, %s18
      // Predicated region
      $region61: #{tpu_custom_call.1} parent=5 // pred_check
        %p1196 = pneg %p1195
      $region62: #{tpu_custom_call.1} parent=5 // pred_check_branch
        %1198 = sbr.rel (%p1196) target = $region64
      $region63: #{tpu_custom_call.1} parent=5 // pred_region
        %s1199 = ssub.s32 %s18, 2
        // Predicated region
        $region65: #{tpu_custom_call.1} parent=63 // pred_check
          %p1200 = pneg %p257
        $region66: #{tpu_custom_call.1} parent=63 // pred_check_branch
          %1202 = sbr.rel (%p1200) target = $region68
        $region67: #{tpu_custom_call.1} parent=63 // pred_region
          %s1203 = sand.u32 %s242, 1
          %s1204 = scalar_lea.sflag [#allocation3], %s1203
          %s1205 = sand.u32 %s242, 1
          %s1206 = smul.addr %s1205, 8
          %s1207 = scalar_lea.vmem [#allocation2], %s1206
          %1208 = dma.done %s1204, 128
        $region68: #{tpu_custom_call.1} parent=63 // pred_fallthru
          _
      $region64: #{tpu_custom_call.1} parent=5 // pred_fallthru
        _
    $region6: #{tpu_custom_call.1} parent=1 // loop_footer
      %s22 = sadd.s32 1, %s18
    $region7: #{tpu_custom_call.1} parent=1 // loop_footer_branch
      %17 = sbr.rel target = $region3
    $region8: #{tpu_custom_call.1} parent=1 // loop_exit
      _
    %1209 = vsyncpa [#allocation3], 1
    %s1210 = scalar_lea.sflag [#allocation3], 1
    %1211 = vsyncpa %s1210, 1

</llo_original>
